<compile_context>
chip_gen: v7x
topology: tpu7x:2x2x1
jax: 0.10.0
libtpu: 0.0.40
codegen_flags: <defaults>
</compile_context>

<pallas_src>
import jax
import jax.numpy as jnp
from jax import lax
from jax.experimental import pallas as pl
from jax.experimental.pallas import tpu as pltpu

# MXU operand dtype (accumulation is always float32).
MATMUL_DTYPE = jnp.bfloat16
# Exact vs EUP-approx reciprocal in the attention softmax.
APPROX_RECIPROCAL = True
# Batch tile: multiple of 8 (f32 sublane tile); also the batch-pad unit.
B_TILE = 8


# -----------------------------------------------------------------------------
# Fused kernel: bidirectional LSTM + attention + linear head (one batch tile)
# -----------------------------------------------------------------------------
def _text_lstm_attn_kernel(
        x_ref,        # (1, T*BT, E)  MATMUL_DTYPE, rows ordered t*BT + b
        wih_ref,      # (E, 8H)       MATMUL_DTYPE, [fwd 4H | bwd 4H], (i,f,o,g)
        b_ref,        # (1, 8H)       f32, b_ih + b_hh, same layout
        whh_f_ref,    # (H, 4H)       MATMUL_DTYPE
        whh_b_ref,    # (H, 4H)       MATMUL_DTYPE
        w_attn_ref,   # (1, 2H)       f32
        w1_ref,       # (2H, 64)      MATMUL_DTYPE
        b1_ref,       # (1, 64)       f32
        w2_ref,       # (64, out)     MATMUL_DTYPE
        b2_ref,       # (1, out)      f32
        y_ref,        # (BT, out)     f32  output tile
        gx_ref):      # (T*BT, 8H)    f32  VMEM scratch: hoisted input proj.
    BT = y_ref.shape[0]
    H = whh_f_ref.shape[0]
    T = gx_ref.shape[0] // BT
    H3, H4 = 3 * H, 4 * H

    # ---- 1. Input projection for all timesteps & both directions as ONE MXU
    #         matmul, bias folded in, written to VMEM scratch (bounds vreg
    #         pressure; per-step reads below are 8-sublane-aligned slices). --
    gx_ref[...] = (jnp.dot(x_ref[0], wih_ref[...],
                           preferred_element_type=jnp.float32) + b_ref[...])

    whh_f = whh_f_ref[...]
    whh_b = whh_b_ref[...]
    md = whh_f.dtype

    # Attention weight, broadcast once (hoisted), stacked fwd-over-bwd along
    # the sublane axis to match the stacked hidden-state layout.
    w_st = jnp.concatenate(
        [jnp.broadcast_to(w_attn_ref[:, :H], (BT, H)),
         jnp.broadcast_to(w_attn_ref[:, H:], (BT, H))], axis=0)   # (2BT, H)

    # Stacked state: rows [0:BT] = forward direction, rows [BT:2BT] = backward.
    h_st = jnp.zeros((2 * BT, H), jnp.float32)
    c_st = jnp.zeros((2 * BT, H), jnp.float32)

    h_hist = []          # per-iteration stacked h, register-resident
    sc_f = [None] * T    # fwd attention-score contribution at time t
    sc_b = [None] * T    # bwd attention-score contribution at time t

    # ---- 2. Recurrence, fully unrolled (T small & static). Forward step t and
    #         backward step T-1-t are interleaved; their gate slabs are stacked
    #         along the sublane axis so each step does one sigmoid slab + one
    #         tanh (single EUP slot) and the c/h updates run at 2x vreg fill.
    #         Only the two (BT,H)@(H,4H) matmuls stay on the serial path. ----
    for t in range(T):
        tb = T - 1 - t
        g_f = gx_ref[t * BT:(t + 1) * BT, :H4] + jnp.dot(
            h_st[:BT].astype(md), whh_f, preferred_element_type=jnp.float32)
        g_b = gx_ref[tb * BT:(tb + 1) * BT, H4:] + jnp.dot(
            h_st[BT:].astype(md), whh_b, preferred_element_type=jnp.float32)
        g = jnp.concatenate([g_f, g_b], axis=0)              # (2BT, 4H)
        # gate columns pre-permuted to (i, f, o, g): 1 sigmoid slab + 1 tanh.
        s = jax.nn.sigmoid(g[:, :H3])
        gg = jnp.tanh(g[:, H3:])
        c_st = s[:, H:2 * H] * c_st + s[:, :H] * gg
        h_st = s[:, 2 * H:H3] * jnp.tanh(c_st)
        h_hist.append(h_st)
        # Fused attention score (off the serial chain: EUP/XLU slack filler).
        sc = jnp.sum(jnp.tanh(h_st) * w_st, axis=-1, keepdims=True)  # (2BT,1)
        sc_f[t] = sc[:BT]
        sc_b[tb] = sc[BT:]

    # ---- 3. Softmax over time + context + head, register-resident (no VMEM
    #         round trip for the hidden states, unrolled weighted adds). -----
    scores = [sc_f[t] + sc_b[t] for t in range(T)]           # T x (BT, 1)
    m = scores[0]
    for t in range(1, T):
        m = jnp.maximum(m, scores[t])
    e = [jnp.exp(scores[t] - m) for t in range(T)]
    denom = e[0]
    for t in range(1, T):
        denom = denom + e[t]
    if APPROX_RECIPROCAL:
        inv = pl.reciprocal(denom, approx=True)
    else:
        inv = 1.0 / denom
    alpha = [e[t] * inv for t in range(T)]                   # T x (BT, 1)

    ctx_st = jnp.zeros((2 * BT, H), jnp.float32)
    for t in range(T):
        tb = T - 1 - t
        a = jnp.concatenate([alpha[t], alpha[tb]], axis=0)   # (2BT, 1)
        ctx_st = ctx_st + a * h_hist[t]
    ctx_st = jnp.maximum(ctx_st, 0.0)                        # relu

    # linear(2H, 64): contraction split over the fwd/bwd halves so the two
    # direction buffers never need a lane-concatenate.
    h1 = (jnp.dot(ctx_st[:BT].astype(md), w1_ref[:H, :],
                  preferred_element_type=jnp.float32)
          + jnp.dot(ctx_st[BT:].astype(md), w1_ref[H:, :],
                    preferred_element_type=jnp.float32)
          + b1_ref[...])
    # nn.Dropout: identity in eval mode.
    y_ref[...] = jnp.dot(h1.astype(md), w2_ref[...],
                         preferred_element_type=jnp.float32) + b2_ref[...]


# -----------------------------------------------------------------------------
# Wrapper
# -----------------------------------------------------------------------------
def _fused_forward(x_tiles, p, T, B_pad):
    n_tiles, rows, E = x_tiles.shape
    BT = B_TILE
    H = p["whh_f"].shape[0]
    out_dim = p["w2"].shape[1]
    grid_spec = pltpu.PrefetchScalarGridSpec(
        num_scalar_prefetch=0,
        grid=(n_tiles,),
        in_specs=[
            pl.BlockSpec((1, rows, E), lambda i: (i, 0, 0)),
            pl.BlockSpec(p["wih"].shape, lambda i: (0, 0)),
            pl.BlockSpec(p["b"].shape, lambda i: (0, 0)),
            pl.BlockSpec(p["whh_f"].shape, lambda i: (0, 0)),
            pl.BlockSpec(p["whh_b"].shape, lambda i: (0, 0)),
            pl.BlockSpec(p["w_attn"].shape, lambda i: (0, 0)),
            pl.BlockSpec(p["w1"].shape, lambda i: (0, 0)),
            pl.BlockSpec(p["b1"].shape, lambda i: (0, 0)),
            pl.BlockSpec(p["w2"].shape, lambda i: (0, 0)),
            pl.BlockSpec(p["b2"].shape, lambda i: (0, 0)),
        ],
        out_specs=pl.BlockSpec((BT, out_dim), lambda i: (i, 0)),
        scratch_shapes=[pltpu.VMEM((T * BT, 8 * H), jnp.float32)],
    )
    return pl.pallas_call(
        _text_lstm_attn_kernel,
        out_shape=jax.ShapeDtypeStruct((B_pad, out_dim), jnp.float32),
        grid_spec=grid_spec,
        compiler_params=pltpu.CompilerParams(
            dimension_semantics=("parallel",),
            vmem_limit_bytes=32 * 1024 * 1024),
    )(x_tiles, p["wih"], p["b"], p["whh_f"], p["whh_b"],
      p["w_attn"], p["w1"], p["b1"], p["w2"], p["b2"])


@jax.jit
def text_lstm_attention_forward(tokens, kparams):
    """tokens: int32 (B, T).  Returns (B, out_dim) float32."""
    B, T = tokens.shape
    n_tiles = (B + B_TILE - 1) // B_TILE
    B_pad = n_tiles * B_TILE
    # Pad batch to a sublane-aligned tile count; padded rows (token 0) are
    # computed independently and sliced off below.
    tokens_p = jnp.pad(tokens, ((0, B_pad - B), (0, 0)))
    # Time-major row order (row = t*B_TILE + b) per batch tile: no (B,T,E)->
    # (T,B,E) activation transpose is ever materialized.
    idx = jnp.transpose(tokens_p.reshape(n_tiles, B_TILE, T), (0, 2, 1))
    idx = idx.reshape(n_tiles, T * B_TILE)
    x_tiles = kparams["embedding"][idx].astype(MATMUL_DTYPE)  # (n_tiles,T*BT,E)
    y = _fused_forward(x_tiles, kparams, T, B_pad)
    return y[:B]


# -----------------------------------------------------------------------------
# Parameters: PyTorch layout + kernel-layout prep
# -----------------------------------------------------------------------------
def make_params(key, vocab_size, embedding_dim, hidden_size, out_dim):
    """PyTorch-layout parameters (nn.Embedding / nn.LSTM / nn.Linear)."""
    H, E = hidden_size, embedding_dim
    ks = jax.random.split(key, 14)
    u = lambda k, shape, s: jax.random.uniform(k, shape, jnp.float32, -s, s)
    s_lstm = 1.0 / float(H) ** 0.5
    s_l1 = 1.0 / float(2 * H) ** 0.5
    s_l2 = 1.0 / 8.0
    return {
        "embedding": jax.random.normal(ks[0], (vocab_size, E), jnp.float32),
        # nn.LSTM parameters, PyTorch gate order (i, f, g, o), per direction.
        "w_ih_f": u(ks[1], (4 * H, E), s_lstm),
        "w_hh_f": u(ks[2], (4 * H, H), s_lstm),
        "b_ih_f": u(ks[3], (4 * H,), s_lstm),
        "b_hh_f": u(ks[4], (4 * H,), s_lstm),
        "w_ih_b": u(ks[5], (4 * H, E), s_lstm),
        "w_hh_b": u(ks[6], (4 * H, H), s_lstm),
        "b_ih_b": u(ks[7], (4 * H,), s_lstm),
        "b_hh_b": u(ks[8], (4 * H,), s_lstm),
        # self.w = nn.Parameter(torch.rand(2H)) -> uniform [0, 1)
        "w_attn": jax.random.uniform(ks[9], (2 * H,), jnp.float32, 0.0, 1.0),
        # nn.Linear weights, PyTorch (out_features, in_features) layout.
        "w1": u(ks[10], (64, 2 * H), s_l1),
        "b1": u(ks[11], (64,), s_l1),
        "w2": u(ks[12], (out_dim, 64), s_l2),
        "b2": u(ks[13], (out_dim,), s_l2),
    }


def prepare_kernel_params(p):
    """PyTorch layout -> kernel layout.

    - weights transposed for x @ W
    - LSTM gate columns permuted (i,f,g,o) -> (i,f,o,g)  (sigmoid slab first)
    - b_ih + b_hh folded; both directions' W_ih concatenated into one (E, 8H)
    - MXU operand weights cast to MATMUL_DTYPE (f32 accumulation in-kernel)
    """
    H = p["w_hh_f"].shape[1]
    perm = jnp.concatenate([jnp.arange(2 * H), jnp.arange(3 * H, 4 * H),
                            jnp.arange(2 * H, 3 * H)])

    def prep_dir(w_ih, w_hh, b_ih, b_hh):
        wih = jnp.transpose(w_ih[perm])            # (E, 4H)
        whh = jnp.transpose(w_hh[perm])            # (H, 4H)
        b = (b_ih + b_hh)[perm][None, :]           # (1, 4H)
        return wih, whh, b

    wih_f, whh_f, b_f = prep_dir(p["w_ih_f"], p["w_hh_f"], p["b_ih_f"], p["b_hh_f"])
    wih_b, whh_b, b_b = prep_dir(p["w_ih_b"], p["w_hh_b"], p["b_ih_b"], p["b_hh_b"])
    md = MATMUL_DTYPE
    return {
        "embedding": p["embedding"],
        "wih": jnp.concatenate([wih_f, wih_b], axis=1).astype(md),   # (E, 8H)
        "b": jnp.concatenate([b_f, b_b], axis=1),                    # (1, 8H)
        "whh_f": whh_f.astype(md),                                   # (H, 4H)
        "whh_b": whh_b.astype(md),
        "w_attn": p["w_attn"][None, :],                              # (1, 2H)
        "w1": jnp.transpose(p["w1"]).astype(md),                     # (2H, 64)
        "b1": p["b1"][None, :],
        "w2": jnp.transpose(p["w2"]).astype(md),                     # (64, out)
        "b2": p["b2"][None, :],
    }


# -----------------------------------------------------------------------------
# Pure-JAX reference (PyTorch semantics, gate order i,f,g,o) using the same
# MXU-operand dtype policy as the kernel so the check stays tight.
# -----------------------------------------------------------------------------
def _reference_forward(tokens, p):
    md = MATMUL_DTYPE
    emb = p["embedding"][tokens]                       # (B, T, E)
    B, T, _E = emb.shape
    H = p["w_hh_f"].shape[1]

    def run_dir(w_ih, w_hh, b_ih, b_hh, xs):           # xs: (T, B, E)
        wih = jnp.transpose(w_ih).astype(md)
        whh = jnp.transpose(w_hh).astype(md)
        b = (b_ih + b_hh)[None, :]

        def step(carry, x_t):
            h, c = carry
            gates = (jnp.dot(x_t.astype(md), wih, preferred_element_type=jnp.float32)
                     + jnp.dot(h.astype(md), whh, preferred_element_type=jnp.float32)
                     + b)
            i = jax.nn.sigmoid(gates[:, 0 * H:1 * H])
            f = jax.nn.sigmoid(gates[:, 1 * H:2 * H])
            g = jnp.tanh(gates[:, 2 * H:3 * H])
            o = jax.nn.sigmoid(gates[:, 3 * H:4 * H])
            c = f * c + i * g
            h = o * jnp.tanh(c)
            return (h, c), h

        h0 = jnp.zeros((B, H), jnp.float32)
        _, hs = lax.scan(step, (h0, h0), xs)
        return hs                                       # (T, B, H)

    xs = jnp.transpose(emb, (1, 0, 2))
    hf = run_dir(p["w_ih_f"], p["w_hh_f"], p["b_ih_f"], p["b_hh_f"], xs)
    hb = run_dir(p["w_ih_b"], p["w_hh_b"], p["b_ih_b"], p["b_hh_b"], xs[::-1])[::-1]
    output = jnp.transpose(jnp.concatenate([hf, hb], -1), (1, 0, 2))  # (B,T,2H)

    m = jnp.tanh(output)
    scores = jnp.einsum("btd,d->bt", m, p["w_attn"])
    alpha = jax.nn.softmax(scores, axis=1)[:, :, None]
    ctx = jax.nn.relu(jnp.sum(output * alpha, axis=1))                # (B, 2H)
    h1 = jnp.dot(ctx.astype(md), jnp.transpose(p["w1"]).astype(md),
                 preferred_element_type=jnp.float32) + p["b1"][None, :]
    return jnp.dot(h1.astype(md), jnp.transpose(p["w2"]).astype(md),
                   preferred_element_type=jnp.float32) + p["b2"][None, :]


if __name__ == "__main__":
    # small config: vocab=50, embedding_dim=32, hidden_size=32, out_dim=4
    B, T = 2, 8
    VOCAB, E, H, OUT = 50, 32, 32, 4

    key = jax.random.PRNGKey(0)
    k_tok, k_par = jax.random.split(key)
    params = make_params(k_par, VOCAB, E, H, OUT)
    tokens = jax.random.randint(k_tok, (B, T), 0, VOCAB, dtype=jnp.int32)

    kparams = prepare_kernel_params(params)
    y = text_lstm_attention_forward(tokens, kparams)
    y = jax.block_until_ready(y)

    y_ref = _reference_forward(tokens, params)
    assert y.shape == (B, OUT), y.shape
    max_err = float(jnp.max(jnp.abs(y - y_ref)))
    # tolerance covers the approx-reciprocal softmax + accumulation-order diffs
    assert jnp.allclose(y, y_ref, atol=1e-2, rtol=1e-2), (max_err, y, y_ref)

    print("KERNEL_OK")
</pallas_src>

<mosaic_0001>
module attributes {stable_mosaic.version = 11 : i64} {
  func.func @_text_lstm_attn_kernel(%arg0: i32, %arg1: memref<1x64x32xbf16, #tpu.memory_space<vmem>>, %arg2: memref<32x256xbf16, #tpu.memory_space<vmem>>, %arg3: memref<1x256xf32, #tpu.memory_space<vmem>>, %arg4: memref<32x128xbf16, #tpu.memory_space<vmem>>, %arg5: memref<32x128xbf16, #tpu.memory_space<vmem>>, %arg6: memref<1x64xf32, #tpu.memory_space<vmem>>, %arg7: memref<64x64xbf16, #tpu.memory_space<vmem>>, %arg8: memref<1x64xf32, #tpu.memory_space<vmem>>, %arg9: memref<64x4xbf16, #tpu.memory_space<vmem>>, %arg10: memref<1x4xf32, #tpu.memory_space<vmem>>, %arg11: memref<8x4xf32, #tpu.memory_space<vmem>>, %arg12: memref<64x256xf32, #tpu.memory_space<vmem>>) attributes {dimension_semantics = [#tpu.dimension_semantics<parallel>], iteration_bounds = array<i64: 1>, scalar_prefetch = 0 : i64, scratch_operands = 1 : i64, tpu.core_type = #tpu.core_type<tc>, window_params = [{transform_indices = @transform_0, window_bounds = array<i64: 1, 64, 32>}, {pipeline_mode = #tpu.pipeline_mode<synchronous>, transform_indices = @transform_1, window_bounds = array<i64: 32, 256>}, {pipeline_mode = #tpu.pipeline_mode<synchronous>, transform_indices = @transform_2, window_bounds = array<i64: 1, 256>}, {pipeline_mode = #tpu.pipeline_mode<synchronous>, transform_indices = @transform_3, window_bounds = array<i64: 32, 128>}, {pipeline_mode = #tpu.pipeline_mode<synchronous>, transform_indices = @transform_4, window_bounds = array<i64: 32, 128>}, {pipeline_mode = #tpu.pipeline_mode<synchronous>, transform_indices = @transform_5, window_bounds = array<i64: 1, 64>}, {pipeline_mode = #tpu.pipeline_mode<synchronous>, transform_indices = @transform_6, window_bounds = array<i64: 64, 64>}, {pipeline_mode = #tpu.pipeline_mode<synchronous>, transform_indices = @transform_7, window_bounds = array<i64: 1, 64>}, {pipeline_mode = #tpu.pipeline_mode<synchronous>, transform_indices = @transform_8, window_bounds = array<i64: 64, 4>}, {pipeline_mode = #tpu.pipeline_mode<synchronous>, transform_indices = @transform_9, window_bounds = array<i64: 1, 4>}, {transform_indices = @transform_10, window_bounds = array<i64: 8, 4>}]} {
    %c0 = arith.constant 0 : index
    %c0_0 = arith.constant 0 : index
    %c0_1 = arith.constant 0 : index
    %0 = vector.load %arg1[%c0, %c0_0, %c0_1] : memref<1x64x32xbf16, #tpu.memory_space<vmem>>, vector<1x64x32xbf16>
    %1 = vector.shape_cast %0 : vector<1x64x32xbf16> to vector<64x32xbf16>
    %c0_2 = arith.constant 0 : index
    %c0_3 = arith.constant 0 : index
    %2 = vector.load %arg2[%c0_2, %c0_3] : memref<32x256xbf16, #tpu.memory_space<vmem>>, vector<32x256xbf16>
    %cst = arith.constant dense<0.000000e+00> : vector<64x256xf32>
    %3 = tpu.matmul %1, %2, %cst {dimension_numbers = #tpu.dot_dimension_numbers<[1], [0], [0], [1], [0, 0, 1, 1], [], []>} : vector<64x32xbf16>, vector<32x256xbf16>, vector<64x256xf32> -> vector<64x256xf32>
    %c0_4 = arith.constant 0 : index
    %c0_5 = arith.constant 0 : index
    %4 = vector.load %arg3[%c0_4, %c0_5] : memref<1x256xf32, #tpu.memory_space<vmem>>, vector<1x256xf32>
    %5 = vector.broadcast %4 : vector<1x256xf32> to vector<64x256xf32>
    %6 = arith.addf %3, %5 : vector<64x256xf32>
    %c0_6 = arith.constant 0 : index
    %c0_7 = arith.constant 0 : index
    %7 = vector.load %arg12[%c0_6, %c0_7] : memref<64x256xf32, #tpu.memory_space<vmem>>, vector<64x256xf32>
    tpu.vector_store %arg12[%c0_6, %c0_7], %6 {strides = array<i32>} : memref<64x256xf32, #tpu.memory_space<vmem>>, vector<64x256xf32>,
    %c0_8 = arith.constant 0 : index
    %c0_9 = arith.constant 0 : index
    %8 = vector.load %arg4[%c0_8, %c0_9] : memref<32x128xbf16, #tpu.memory_space<vmem>>, vector<32x128xbf16>
    %c0_10 = arith.constant 0 : index
    %c0_11 = arith.constant 0 : index
    %9 = vector.load %arg5[%c0_10, %c0_11] : memref<32x128xbf16, #tpu.memory_space<vmem>>, vector<32x128xbf16>
    %c0_12 = arith.constant 0 : index
    %c0_13 = arith.constant 0 : index
    %10 = vector.load %arg6[%c0_12, %c0_13] : memref<1x64xf32, #tpu.memory_space<vmem>>, vector<1x32xf32>
    %11 = vector.shape_cast %10 : vector<1x32xf32> to vector<1x32xf32>
    %12 = vector.broadcast %11 : vector<1x32xf32> to vector<8x32xf32>
    %c0_14 = arith.constant 0 : index
    %c32 = arith.constant 32 : index
    %13 = vector.load %arg6[%c0_14, %c32] : memref<1x64xf32, #tpu.memory_space<vmem>>, vector<1x32xf32>
    %14 = vector.shape_cast %13 : vector<1x32xf32> to vector<1x32xf32>
    %15 = vector.broadcast %14 : vector<1x32xf32> to vector<8x32xf32>
    %16 = tpu.concatenate %12, %15 in 0 : vector<8x32xf32>, vector<8x32xf32> -> vector<16x32xf32>
    %cst_15 = arith.constant 0.000000e+00 : f32
    %17 = vector.broadcast %cst_15 : f32 to vector<16x32xf32>
    %cst_16 = arith.constant 0.000000e+00 : f32
    %18 = vector.broadcast %cst_16 : f32 to vector<16x32xf32>
    %c0_17 = arith.constant 0 : index
    %c0_18 = arith.constant 0 : index
    %19 = vector.load %arg12[%c0_17, %c0_18] : memref<64x256xf32, #tpu.memory_space<vmem>>, vector<8x128xf32>
    %20 = vector.extract_strided_slice %17 {offsets = [0, 0], sizes = [8, 32], strides = [1, 1]} : vector<16x32xf32> to vector<8x32xf32>
    %21 = arith.truncf %20 : vector<8x32xf32> to vector<8x32xbf16>
    %cst_19 = arith.constant dense<0.000000e+00> : vector<8x128xf32>
    %22 = tpu.matmul %21, %8, %cst_19 {dimension_numbers = #tpu.dot_dimension_numbers<[1], [0], [0], [1], [0, 0, 1, 1], [], []>} : vector<8x32xbf16>, vector<32x128xbf16>, vector<8x128xf32> -> vector<8x128xf32>
    %23 = arith.addf %19, %22 : vector<8x128xf32>
    %c56 = arith.constant 56 : index
    %c128 = arith.constant 128 : index
    %24 = vector.load %arg12[%c56, %c128] : memref<64x256xf32, #tpu.memory_space<vmem>>, vector<8x128xf32>
    %25 = vector.extract_strided_slice %17 {offsets = [8, 0], sizes = [8, 32], strides = [1, 1]} : vector<16x32xf32> to vector<8x32xf32>
    %26 = arith.truncf %25 : vector<8x32xf32> to vector<8x32xbf16>
    %cst_20 = arith.constant dense<0.000000e+00> : vector<8x128xf32>
    %27 = tpu.matmul %26, %9, %cst_20 {dimension_numbers = #tpu.dot_dimension_numbers<[1], [0], [0], [1], [0, 0, 1, 1], [], []>} : vector<8x32xbf16>, vector<32x128xbf16>, vector<8x128xf32> -> vector<8x128xf32>
    %28 = arith.addf %24, %27 : vector<8x128xf32>
    %29 = tpu.concatenate %23, %28 in 0 : vector<8x128xf32>, vector<8x128xf32> -> vector<16x128xf32>
    %30 = vector.extract_strided_slice %29 {offsets = [0, 0], sizes = [16, 96], strides = [1, 1]} : vector<16x128xf32> to vector<16x96xf32>
    %31 = arith.negf %30 : vector<16x96xf32>
    %32 = math.exp %31 : vector<16x96xf32>
    %cst_21 = arith.constant 1.000000e+00 : f32
    %33 = vector.broadcast %cst_21 : f32 to vector<16x96xf32>
    %34 = arith.addf %33, %32 : vector<16x96xf32>
    %35 = arith.divf %33, %34 : vector<16x96xf32>
    %36 = vector.extract_strided_slice %29 {offsets = [0, 96], sizes = [16, 32], strides = [1, 1]} : vector<16x128xf32> to vector<16x32xf32>
    %37 = math.tanh %36 : vector<16x32xf32>
    %38 = vector.extract_strided_slice %35 {offsets = [0, 32], sizes = [16, 32], strides = [1, 1]} : vector<16x96xf32> to vector<16x32xf32>
    %39 = arith.mulf %38, %18 : vector<16x32xf32>
    %40 = vector.extract_strided_slice %35 {offsets = [0, 0], sizes = [16, 32], strides = [1, 1]} : vector<16x96xf32> to vector<16x32xf32>
    %41 = arith.mulf %40, %37 : vector<16x32xf32>
    %42 = arith.addf %39, %41 : vector<16x32xf32>
    %43 = vector.extract_strided_slice %35 {offsets = [0, 64], sizes = [16, 32], strides = [1, 1]} : vector<16x96xf32> to vector<16x32xf32>
    %44 = math.tanh %42 : vector<16x32xf32>
    %45 = arith.mulf %43, %44 : vector<16x32xf32>
    %46 = math.tanh %45 : vector<16x32xf32>
    %47 = arith.mulf %46, %16 : vector<16x32xf32>
    %cst_22 = arith.constant dense<0.000000e+00> : vector<16xf32>
    %48 = vector.multi_reduction <add>, %47, %cst_22 [1] : vector<16x32xf32> to vector<16xf32>
    %49 = vector.shape_cast %48 : vector<16xf32> to vector<16x1xf32>
    %50 = vector.extract_strided_slice %49 {offsets = [0, 0], sizes = [8, 1], strides = [1, 1]} : vector<16x1xf32> to vector<8x1xf32>
    %51 = vector.extract_strided_slice %49 {offsets = [8, 0], sizes = [8, 1], strides = [1, 1]} : vector<16x1xf32> to vector<8x1xf32>
    %c8 = arith.constant 8 : index
    %c0_23 = arith.constant 0 : index
    %52 = vector.load %arg12[%c8, %c0_23] : memref<64x256xf32, #tpu.memory_space<vmem>>, vector<8x128xf32>
    %53 = vector.extract_strided_slice %45 {offsets = [0, 0], sizes = [8, 32], strides = [1, 1]} : vector<16x32xf32> to vector<8x32xf32>
    %54 = arith.truncf %53 : vector<8x32xf32> to vector<8x32xbf16>
    %cst_24 = arith.constant dense<0.000000e+00> : vector<8x128xf32>
    %55 = tpu.matmul %54, %8, %cst_24 {dimension_numbers = #tpu.dot_dimension_numbers<[1], [0], [0], [1], [0, 0, 1, 1], [], []>} : vector<8x32xbf16>, vector<32x128xbf16>, vector<8x128xf32> -> vector<8x128xf32>
    %56 = arith.addf %52, %55 : vector<8x128xf32>
    %c48 = arith.constant 48 : index
    %c128_25 = arith.constant 128 : index
    %57 = vector.load %arg12[%c48, %c128_25] : memref<64x256xf32, #tpu.memory_space<vmem>>, vector<8x128xf32>
    %58 = vector.extract_strided_slice %45 {offsets = [8, 0], sizes = [8, 32], strides = [1, 1]} : vector<16x32xf32> to vector<8x32xf32>
    %59 = arith.truncf %58 : vector<8x32xf32> to vector<8x32xbf16>
    %cst_26 = arith.constant dense<0.000000e+00> : vector<8x128xf32>
    %60 = tpu.matmul %59, %9, %cst_26 {dimension_numbers = #tpu.dot_dimension_numbers<[1], [0], [0], [1], [0, 0, 1, 1], [], []>} : vector<8x32xbf16>, vector<32x128xbf16>, vector<8x128xf32> -> vector<8x128xf32>
    %61 = arith.addf %57, %60 : vector<8x128xf32>
    %62 = tpu.concatenate %56, %61 in 0 : vector<8x128xf32>, vector<8x128xf32> -> vector<16x128xf32>
    %63 = vector.extract_strided_slice %62 {offsets = [0, 0], sizes = [16, 96], strides = [1, 1]} : vector<16x128xf32> to vector<16x96xf32>
    %64 = arith.negf %63 : vector<16x96xf32>
    %65 = math.exp %64 : vector<16x96xf32>
    %cst_27 = arith.constant 1.000000e+00 : f32
    %66 = vector.broadcast %cst_27 : f32 to vector<16x96xf32>
    %67 = arith.addf %66, %65 : vector<16x96xf32>
    %68 = arith.divf %66, %67 : vector<16x96xf32>
    %69 = vector.extract_strided_slice %62 {offsets = [0, 96], sizes = [16, 32], strides = [1, 1]} : vector<16x128xf32> to vector<16x32xf32>
    %70 = math.tanh %69 : vector<16x32xf32>
    %71 = vector.extract_strided_slice %68 {offsets = [0, 32], sizes = [16, 32], strides = [1, 1]} : vector<16x96xf32> to vector<16x32xf32>
    %72 = arith.mulf %71, %42 : vector<16x32xf32>
    %73 = vector.extract_strided_slice %68 {offsets = [0, 0], sizes = [16, 32], strides = [1, 1]} : vector<16x96xf32> to vector<16x32xf32>
    %74 = arith.mulf %73, %70 : vector<16x32xf32>
    %75 = arith.addf %72, %74 : vector<16x32xf32>
    %76 = vector.extract_strided_slice %68 {offsets = [0, 64], sizes = [16, 32], strides = [1, 1]} : vector<16x96xf32> to vector<16x32xf32>
    %77 = math.tanh %75 : vector<16x32xf32>
    %78 = arith.mulf %76, %77 : vector<16x32xf32>
    %79 = math.tanh %78 : vector<16x32xf32>
    %80 = arith.mulf %79, %16 : vector<16x32xf32>
    %cst_28 = arith.constant dense<0.000000e+00> : vector<16xf32>
    %81 = vector.multi_reduction <add>, %80, %cst_28 [1] : vector<16x32xf32> to vector<16xf32>
    %82 = vector.shape_cast %81 : vector<16xf32> to vector<16x1xf32>
    %83 = vector.extract_strided_slice %82 {offsets = [0, 0], sizes = [8, 1], strides = [1, 1]} : vector<16x1xf32> to vector<8x1xf32>
    %84 = vector.extract_strided_slice %82 {offsets = [8, 0], sizes = [8, 1], strides = [1, 1]} : vector<16x1xf32> to vector<8x1xf32>
    %c16 = arith.constant 16 : index
    %c0_29 = arith.constant 0 : index
    %85 = vector.load %arg12[%c16, %c0_29] : memref<64x256xf32, #tpu.memory_space<vmem>>, vector<8x128xf32>
    %86 = vector.extract_strided_slice %78 {offsets = [0, 0], sizes = [8, 32], strides = [1, 1]} : vector<16x32xf32> to vector<8x32xf32>
    %87 = arith.truncf %86 : vector<8x32xf32> to vector<8x32xbf16>
    %cst_30 = arith.constant dense<0.000000e+00> : vector<8x128xf32>
    %88 = tpu.matmul %87, %8, %cst_30 {dimension_numbers = #tpu.dot_dimension_numbers<[1], [0], [0], [1], [0, 0, 1, 1], [], []>} : vector<8x32xbf16>, vector<32x128xbf16>, vector<8x128xf32> -> vector<8x128xf32>
    %89 = arith.addf %85, %88 : vector<8x128xf32>
    %c40 = arith.constant 40 : index
    %c128_31 = arith.constant 128 : index
    %90 = vector.load %arg12[%c40, %c128_31] : memref<64x256xf32, #tpu.memory_space<vmem>>, vector<8x128xf32>
    %91 = vector.extract_strided_slice %78 {offsets = [8, 0], sizes = [8, 32], strides = [1, 1]} : vector<16x32xf32> to vector<8x32xf32>
    %92 = arith.truncf %91 : vector<8x32xf32> to vector<8x32xbf16>
    %cst_32 = arith.constant dense<0.000000e+00> : vector<8x128xf32>
    %93 = tpu.matmul %92, %9, %cst_32 {dimension_numbers = #tpu.dot_dimension_numbers<[1], [0], [0], [1], [0, 0, 1, 1], [], []>} : vector<8x32xbf16>, vector<32x128xbf16>, vector<8x128xf32> -> vector<8x128xf32>
    %94 = arith.addf %90, %93 : vector<8x128xf32>
    %95 = tpu.concatenate %89, %94 in 0 : vector<8x128xf32>, vector<8x128xf32> -> vector<16x128xf32>
    %96 = vector.extract_strided_slice %95 {offsets = [0, 0], sizes = [16, 96], strides = [1, 1]} : vector<16x128xf32> to vector<16x96xf32>
    %97 = arith.negf %96 : vector<16x96xf32>
    %98 = math.exp %97 : vector<16x96xf32>
    %cst_33 = arith.constant 1.000000e+00 : f32
    %99 = vector.broadcast %cst_33 : f32 to vector<16x96xf32>
    %100 = arith.addf %99, %98 : vector<16x96xf32>
    %101 = arith.divf %99, %100 : vector<16x96xf32>
    %102 = vector.extract_strided_slice %95 {offsets = [0, 96], sizes = [16, 32], strides = [1, 1]} : vector<16x128xf32> to vector<16x32xf32>
    %103 = math.tanh %102 : vector<16x32xf32>
    %104 = vector.extract_strided_slice %101 {offsets = [0, 32], sizes = [16, 32], strides = [1, 1]} : vector<16x96xf32> to vector<16x32xf32>
    %105 = arith.mulf %104, %75 : vector<16x32xf32>
    %106 = vector.extract_strided_slice %101 {offsets = [0, 0], sizes = [16, 32], strides = [1, 1]} : vector<16x96xf32> to vector<16x32xf32>
    %107 = arith.mulf %106, %103 : vector<16x32xf32>
    %108 = arith.addf %105, %107 : vector<16x32xf32>
    %109 = vector.extract_strided_slice %101 {offsets = [0, 64], sizes = [16, 32], strides = [1, 1]} : vector<16x96xf32> to vector<16x32xf32>
    %110 = math.tanh %108 : vector<16x32xf32>
    %111 = arith.mulf %109, %110 : vector<16x32xf32>
    %112 = math.tanh %111 : vector<16x32xf32>
    %113 = arith.mulf %112, %16 : vector<16x32xf32>
    %cst_34 = arith.constant dense<0.000000e+00> : vector<16xf32>
    %114 = vector.multi_reduction <add>, %113, %cst_34 [1] : vector<16x32xf32> to vector<16xf32>
    %115 = vector.shape_cast %114 : vector<16xf32> to vector<16x1xf32>
    %116 = vector.extract_strided_slice %115 {offsets = [0, 0], sizes = [8, 1], strides = [1, 1]} : vector<16x1xf32> to vector<8x1xf32>
    %117 = vector.extract_strided_slice %115 {offsets = [8, 0], sizes = [8, 1], strides = [1, 1]} : vector<16x1xf32> to vector<8x1xf32>
    %c24 = arith.constant 24 : index
    %c0_35 = arith.constant 0 : index
    %118 = vector.load %arg12[%c24, %c0_35] : memref<64x256xf32, #tpu.memory_space<vmem>>, vector<8x128xf32>
    %119 = vector.extract_strided_slice %111 {offsets = [0, 0], sizes = [8, 32], strides = [1, 1]} : vector<16x32xf32> to vector<8x32xf32>
    %120 = arith.truncf %119 : vector<8x32xf32> to vector<8x32xbf16>
    %cst_36 = arith.constant dense<0.000000e+00> : vector<8x128xf32>
    %121 = tpu.matmul %120, %8, %cst_36 {dimension_numbers = #tpu.dot_dimension_numbers<[1], [0], [0], [1], [0, 0, 1, 1], [], []>} : vector<8x32xbf16>, vector<32x128xbf16>, vector<8x128xf32> -> vector<8x128xf32>
    %122 = arith.addf %118, %121 : vector<8x128xf32>
    %c32_37 = arith.constant 32 : index
    %c128_38 = arith.constant 128 : index
    %123 = vector.load %arg12[%c32_37, %c128_38] : memref<64x256xf32, #tpu.memory_space<vmem>>, vector<8x128xf32>
    %124 = vector.extract_strided_slice %111 {offsets = [8, 0], sizes = [8, 32], strides = [1, 1]} : vector<16x32xf32> to vector<8x32xf32>
    %125 = arith.truncf %124 : vector<8x32xf32> to vector<8x32xbf16>
    %cst_39 = arith.constant dense<0.000000e+00> : vector<8x128xf32>
    %126 = tpu.matmul %125, %9, %cst_39 {dimension_numbers = #tpu.dot_dimension_numbers<[1], [0], [0], [1], [0, 0, 1, 1], [], []>} : vector<8x32xbf16>, vector<32x128xbf16>, vector<8x128xf32> -> vector<8x128xf32>
    %127 = arith.addf %123, %126 : vector<8x128xf32>
    %128 = tpu.concatenate %122, %127 in 0 : vector<8x128xf32>, vector<8x128xf32> -> vector<16x128xf32>
    %129 = vector.extract_strided_slice %128 {offsets = [0, 0], sizes = [16, 96], strides = [1, 1]} : vector<16x128xf32> to vector<16x96xf32>
    %130 = arith.negf %129 : vector<16x96xf32>
    %131 = math.exp %130 : vector<16x96xf32>
    %cst_40 = arith.constant 1.000000e+00 : f32
    %132 = vector.broadcast %cst_40 : f32 to vector<16x96xf32>
    %133 = arith.addf %132, %131 : vector<16x96xf32>
    %134 = arith.divf %132, %133 : vector<16x96xf32>
    %135 = vector.extract_strided_slice %128 {offsets = [0, 96], sizes = [16, 32], strides = [1, 1]} : vector<16x128xf32> to vector<16x32xf32>
    %136 = math.tanh %135 : vector<16x32xf32>
    %137 = vector.extract_strided_slice %134 {offsets = [0, 32], sizes = [16, 32], strides = [1, 1]} : vector<16x96xf32> to vector<16x32xf32>
    %138 = arith.mulf %137, %108 : vector<16x32xf32>
    %139 = vector.extract_strided_slice %134 {offsets = [0, 0], sizes = [16, 32], strides = [1, 1]} : vector<16x96xf32> to vector<16x32xf32>
    %140 = arith.mulf %139, %136 : vector<16x32xf32>
    %141 = arith.addf %138, %140 : vector<16x32xf32>
    %142 = vector.extract_strided_slice %134 {offsets = [0, 64], sizes = [16, 32], strides = [1, 1]} : vector<16x96xf32> to vector<16x32xf32>
    %143 = math.tanh %141 : vector<16x32xf32>
    %144 = arith.mulf %142, %143 : vector<16x32xf32>
    %145 = math.tanh %144 : vector<16x32xf32>
    %146 = arith.mulf %145, %16 : vector<16x32xf32>
    %cst_41 = arith.constant dense<0.000000e+00> : vector<16xf32>
    %147 = vector.multi_reduction <add>, %146, %cst_41 [1] : vector<16x32xf32> to vector<16xf32>
    %148 = vector.shape_cast %147 : vector<16xf32> to vector<16x1xf32>
    %149 = vector.extract_strided_slice %148 {offsets = [0, 0], sizes = [8, 1], strides = [1, 1]} : vector<16x1xf32> to vector<8x1xf32>
    %150 = vector.extract_strided_slice %148 {offsets = [8, 0], sizes = [8, 1], strides = [1, 1]} : vector<16x1xf32> to vector<8x1xf32>
    %c32_42 = arith.constant 32 : index
    %c0_43 = arith.constant 0 : index
    %151 = vector.load %arg12[%c32_42, %c0_43] : memref<64x256xf32, #tpu.memory_space<vmem>>, vector<8x128xf32>
    %152 = vector.extract_strided_slice %144 {offsets = [0, 0], sizes = [8, 32], strides = [1, 1]} : vector<16x32xf32> to vector<8x32xf32>
    %153 = arith.truncf %152 : vector<8x32xf32> to vector<8x32xbf16>
    %cst_44 = arith.constant dense<0.000000e+00> : vector<8x128xf32>
    %154 = tpu.matmul %153, %8, %cst_44 {dimension_numbers = #tpu.dot_dimension_numbers<[1], [0], [0], [1], [0, 0, 1, 1], [], []>} : vector<8x32xbf16>, vector<32x128xbf16>, vector<8x128xf32> -> vector<8x128xf32>
    %155 = arith.addf %151, %154 : vector<8x128xf32>
    %c24_45 = arith.constant 24 : index
    %c128_46 = arith.constant 128 : index
    %156 = vector.load %arg12[%c24_45, %c128_46] : memref<64x256xf32, #tpu.memory_space<vmem>>, vector<8x128xf32>
    %157 = vector.extract_strided_slice %144 {offsets = [8, 0], sizes = [8, 32], strides = [1, 1]} : vector<16x32xf32> to vector<8x32xf32>
    %158 = arith.truncf %157 : vector<8x32xf32> to vector<8x32xbf16>
    %cst_47 = arith.constant dense<0.000000e+00> : vector<8x128xf32>
    %159 = tpu.matmul %158, %9, %cst_47 {dimension_numbers = #tpu.dot_dimension_numbers<[1], [0], [0], [1], [0, 0, 1, 1], [], []>} : vector<8x32xbf16>, vector<32x128xbf16>, vector<8x128xf32> -> vector<8x128xf32>
    %160 = arith.addf %156, %159 : vector<8x128xf32>
    %161 = tpu.concatenate %155, %160 in 0 : vector<8x128xf32>, vector<8x128xf32> -> vector<16x128xf32>
    %162 = vector.extract_strided_slice %161 {offsets = [0, 0], sizes = [16, 96], strides = [1, 1]} : vector<16x128xf32> to vector<16x96xf32>
    %163 = arith.negf %162 : vector<16x96xf32>
    %164 = math.exp %163 : vector<16x96xf32>
    %cst_48 = arith.constant 1.000000e+00 : f32
    %165 = vector.broadcast %cst_48 : f32 to vector<16x96xf32>
    %166 = arith.addf %165, %164 : vector<16x96xf32>
    %167 = arith.divf %165, %166 : vector<16x96xf32>
    %168 = vector.extract_strided_slice %161 {offsets = [0, 96], sizes = [16, 32], strides = [1, 1]} : vector<16x128xf32> to vector<16x32xf32>
    %169 = math.tanh %168 : vector<16x32xf32>
    %170 = vector.extract_strided_slice %167 {offsets = [0, 32], sizes = [16, 32], strides = [1, 1]} : vector<16x96xf32> to vector<16x32xf32>
    %171 = arith.mulf %170, %141 : vector<16x32xf32>
    %172 = vector.extract_strided_slice %167 {offsets = [0, 0], sizes = [16, 32], strides = [1, 1]} : vector<16x96xf32> to vector<16x32xf32>
    %173 = arith.mulf %172, %169 : vector<16x32xf32>
    %174 = arith.addf %171, %173 : vector<16x32xf32>
    %175 = vector.extract_strided_slice %167 {offsets = [0, 64], sizes = [16, 32], strides = [1, 1]} : vector<16x96xf32> to vector<16x32xf32>
    %176 = math.tanh %174 : vector<16x32xf32>
    %177 = arith.mulf %175, %176 : vector<16x32xf32>
    %178 = math.tanh %177 : vector<16x32xf32>
    %179 = arith.mulf %178, %16 : vector<16x32xf32>
    %cst_49 = arith.constant dense<0.000000e+00> : vector<16xf32>
    %180 = vector.multi_reduction <add>, %179, %cst_49 [1] : vector<16x32xf32> to vector<16xf32>
    %181 = vector.shape_cast %180 : vector<16xf32> to vector<16x1xf32>
    %182 = vector.extract_strided_slice %181 {offsets = [0, 0], sizes = [8, 1], strides = [1, 1]} : vector<16x1xf32> to vector<8x1xf32>
    %183 = vector.extract_strided_slice %181 {offsets = [8, 0], sizes = [8, 1], strides = [1, 1]} : vector<16x1xf32> to vector<8x1xf32>
    %c40_50 = arith.constant 40 : index
    %c0_51 = arith.constant 0 : index
    %184 = vector.load %arg12[%c40_50, %c0_51] : memref<64x256xf32, #tpu.memory_space<vmem>>, vector<8x128xf32>
    %185 = vector.extract_strided_slice %177 {offsets = [0, 0], sizes = [8, 32], strides = [1, 1]} : vector<16x32xf32> to vector<8x32xf32>
    %186 = arith.truncf %185 : vector<8x32xf32> to vector<8x32xbf16>
    %cst_52 = arith.constant dense<0.000000e+00> : vector<8x128xf32>
    %187 = tpu.matmul %186, %8, %cst_52 {dimension_numbers = #tpu.dot_dimension_numbers<[1], [0], [0], [1], [0, 0, 1, 1], [], []>} : vector<8x32xbf16>, vector<32x128xbf16>, vector<8x128xf32> -> vector<8x128xf32>
    %188 = arith.addf %184, %187 : vector<8x128xf32>
    %c16_53 = arith.constant 16 : index
    %c128_54 = arith.constant 128 : index
    %189 = vector.load %arg12[%c16_53, %c128_54] : memref<64x256xf32, #tpu.memory_space<vmem>>, vector<8x128xf32>
    %190 = vector.extract_strided_slice %177 {offsets = [8, 0], sizes = [8, 32], strides = [1, 1]} : vector<16x32xf32> to vector<8x32xf32>
    %191 = arith.truncf %190 : vector<8x32xf32> to vector<8x32xbf16>
    %cst_55 = arith.constant dense<0.000000e+00> : vector<8x128xf32>
    %192 = tpu.matmul %191, %9, %cst_55 {dimension_numbers = #tpu.dot_dimension_numbers<[1], [0], [0], [1], [0, 0, 1, 1], [], []>} : vector<8x32xbf16>, vector<32x128xbf16>, vector<8x128xf32> -> vector<8x128xf32>
    %193 = arith.addf %189, %192 : vector<8x128xf32>
    %194 = tpu.concatenate %188, %193 in 0 : vector<8x128xf32>, vector<8x128xf32> -> vector<16x128xf32>
    %195 = vector.extract_strided_slice %194 {offsets = [0, 0], sizes = [16, 96], strides = [1, 1]} : vector<16x128xf32> to vector<16x96xf32>
    %196 = arith.negf %195 : vector<16x96xf32>
    %197 = math.exp %196 : vector<16x96xf32>
    %cst_56 = arith.constant 1.000000e+00 : f32
    %198 = vector.broadcast %cst_56 : f32 to vector<16x96xf32>
    %199 = arith.addf %198, %197 : vector<16x96xf32>
    %200 = arith.divf %198, %199 : vector<16x96xf32>
    %201 = vector.extract_strided_slice %194 {offsets = [0, 96], sizes = [16, 32], strides = [1, 1]} : vector<16x128xf32> to vector<16x32xf32>
    %202 = math.tanh %201 : vector<16x32xf32>
    %203 = vector.extract_strided_slice %200 {offsets = [0, 32], sizes = [16, 32], strides = [1, 1]} : vector<16x96xf32> to vector<16x32xf32>
    %204 = arith.mulf %203, %174 : vector<16x32xf32>
    %205 = vector.extract_strided_slice %200 {offsets = [0, 0], sizes = [16, 32], strides = [1, 1]} : vector<16x96xf32> to vector<16x32xf32>
    %206 = arith.mulf %205, %202 : vector<16x32xf32>
    %207 = arith.addf %204, %206 : vector<16x32xf32>
    %208 = vector.extract_strided_slice %200 {offsets = [0, 64], sizes = [16, 32], strides = [1, 1]} : vector<16x96xf32> to vector<16x32xf32>
    %209 = math.tanh %207 : vector<16x32xf32>
    %210 = arith.mulf %208, %209 : vector<16x32xf32>
    %211 = math.tanh %210 : vector<16x32xf32>
    %212 = arith.mulf %211, %16 : vector<16x32xf32>
    %cst_57 = arith.constant dense<0.000000e+00> : vector<16xf32>
    %213 = vector.multi_reduction <add>, %212, %cst_57 [1] : vector<16x32xf32> to vector<16xf32>
    %214 = vector.shape_cast %213 : vector<16xf32> to vector<16x1xf32>
    %215 = vector.extract_strided_slice %214 {offsets = [0, 0], sizes = [8, 1], strides = [1, 1]} : vector<16x1xf32> to vector<8x1xf32>
    %216 = vector.extract_strided_slice %214 {offsets = [8, 0], sizes = [8, 1], strides = [1, 1]} : vector<16x1xf32> to vector<8x1xf32>
    %c48_58 = arith.constant 48 : index
    %c0_59 = arith.constant 0 : index
    %217 = vector.load %arg12[%c48_58, %c0_59] : memref<64x256xf32, #tpu.memory_space<vmem>>, vector<8x128xf32>
    %218 = vector.extract_strided_slice %210 {offsets = [0, 0], sizes = [8, 32], strides = [1, 1]} : vector<16x32xf32> to vector<8x32xf32>
    %219 = arith.truncf %218 : vector<8x32xf32> to vector<8x32xbf16>
    %cst_60 = arith.constant dense<0.000000e+00> : vector<8x128xf32>
    %220 = tpu.matmul %219, %8, %cst_60 {dimension_numbers = #tpu.dot_dimension_numbers<[1], [0], [0], [1], [0, 0, 1, 1], [], []>} : vector<8x32xbf16>, vector<32x128xbf16>, vector<8x128xf32> -> vector<8x128xf32>
    %221 = arith.addf %217, %220 : vector<8x128xf32>
    %c8_61 = arith.constant 8 : index
    %c128_62 = arith.constant 128 : index
    %222 = vector.load %arg12[%c8_61, %c128_62] : memref<64x256xf32, #tpu.memory_space<vmem>>, vector<8x128xf32>
    %223 = vector.extract_strided_slice %210 {offsets = [8, 0], sizes = [8, 32], strides = [1, 1]} : vector<16x32xf32> to vector<8x32xf32>
    %224 = arith.truncf %223 : vector<8x32xf32> to vector<8x32xbf16>
    %cst_63 = arith.constant dense<0.000000e+00> : vector<8x128xf32>
    %225 = tpu.matmul %224, %9, %cst_63 {dimension_numbers = #tpu.dot_dimension_numbers<[1], [0], [0], [1], [0, 0, 1, 1], [], []>} : vector<8x32xbf16>, vector<32x128xbf16>, vector<8x128xf32> -> vector<8x128xf32>
    %226 = arith.addf %222, %225 : vector<8x128xf32>
    %227 = tpu.concatenate %221, %226 in 0 : vector<8x128xf32>, vector<8x128xf32> -> vector<16x128xf32>
    %228 = vector.extract_strided_slice %227 {offsets = [0, 0], sizes = [16, 96], strides = [1, 1]} : vector<16x128xf32> to vector<16x96xf32>
    %229 = arith.negf %228 : vector<16x96xf32>
    %230 = math.exp %229 : vector<16x96xf32>
    %cst_64 = arith.constant 1.000000e+00 : f32
    %231 = vector.broadcast %cst_64 : f32 to vector<16x96xf32>
    %232 = arith.addf %231, %230 : vector<16x96xf32>
    %233 = arith.divf %231, %232 : vector<16x96xf32>
    %234 = vector.extract_strided_slice %227 {offsets = [0, 96], sizes = [16, 32], strides = [1, 1]} : vector<16x128xf32> to vector<16x32xf32>
    %235 = math.tanh %234 : vector<16x32xf32>
    %236 = vector.extract_strided_slice %233 {offsets = [0, 32], sizes = [16, 32], strides = [1, 1]} : vector<16x96xf32> to vector<16x32xf32>
    %237 = arith.mulf %236, %207 : vector<16x32xf32>
    %238 = vector.extract_strided_slice %233 {offsets = [0, 0], sizes = [16, 32], strides = [1, 1]} : vector<16x96xf32> to vector<16x32xf32>
    %239 = arith.mulf %238, %235 : vector<16x32xf32>
    %240 = arith.addf %237, %239 : vector<16x32xf32>
    %241 = vector.extract_strided_slice %233 {offsets = [0, 64], sizes = [16, 32], strides = [1, 1]} : vector<16x96xf32> to vector<16x32xf32>
    %242 = math.tanh %240 : vector<16x32xf32>
    %243 = arith.mulf %241, %242 : vector<16x32xf32>
    %244 = math.tanh %243 : vector<16x32xf32>
    %245 = arith.mulf %244, %16 : vector<16x32xf32>
    %cst_65 = arith.constant dense<0.000000e+00> : vector<16xf32>
    %246 = vector.multi_reduction <add>, %245, %cst_65 [1] : vector<16x32xf32> to vector<16xf32>
    %247 = vector.shape_cast %246 : vector<16xf32> to vector<16x1xf32>
    %248 = vector.extract_strided_slice %247 {offsets = [0, 0], sizes = [8, 1], strides = [1, 1]} : vector<16x1xf32> to vector<8x1xf32>
    %249 = vector.extract_strided_slice %247 {offsets = [8, 0], sizes = [8, 1], strides = [1, 1]} : vector<16x1xf32> to vector<8x1xf32>
    %c56_66 = arith.constant 56 : index
    %c0_67 = arith.constant 0 : index
    %250 = vector.load %arg12[%c56_66, %c0_67] : memref<64x256xf32, #tpu.memory_space<vmem>>, vector<8x128xf32>
    %251 = vector.extract_strided_slice %243 {offsets = [0, 0], sizes = [8, 32], strides = [1, 1]} : vector<16x32xf32> to vector<8x32xf32>
    %252 = arith.truncf %251 : vector<8x32xf32> to vector<8x32xbf16>
    %cst_68 = arith.constant dense<0.000000e+00> : vector<8x128xf32>
    %253 = tpu.matmul %252, %8, %cst_68 {dimension_numbers = #tpu.dot_dimension_numbers<[1], [0], [0], [1], [0, 0, 1, 1], [], []>} : vector<8x32xbf16>, vector<32x128xbf16>, vector<8x128xf32> -> vector<8x128xf32>
    %254 = arith.addf %250, %253 : vector<8x128xf32>
    %c0_69 = arith.constant 0 : index
    %c128_70 = arith.constant 128 : index
    %255 = vector.load %arg12[%c0_69, %c128_70] : memref<64x256xf32, #tpu.memory_space<vmem>>, vector<8x128xf32>
    %256 = vector.extract_strided_slice %243 {offsets = [8, 0], sizes = [8, 32], strides = [1, 1]} : vector<16x32xf32> to vector<8x32xf32>
    %257 = arith.truncf %256 : vector<8x32xf32> to vector<8x32xbf16>
    %cst_71 = arith.constant dense<0.000000e+00> : vector<8x128xf32>
    %258 = tpu.matmul %257, %9, %cst_71 {dimension_numbers = #tpu.dot_dimension_numbers<[1], [0], [0], [1], [0, 0, 1, 1], [], []>} : vector<8x32xbf16>, vector<32x128xbf16>, vector<8x128xf32> -> vector<8x128xf32>
    %259 = arith.addf %255, %258 : vector<8x128xf32>
    %260 = tpu.concatenate %254, %259 in 0 : vector<8x128xf32>, vector<8x128xf32> -> vector<16x128xf32>
    %261 = vector.extract_strided_slice %260 {offsets = [0, 0], sizes = [16, 96], strides = [1, 1]} : vector<16x128xf32> to vector<16x96xf32>
    %262 = arith.negf %261 : vector<16x96xf32>
    %263 = math.exp %262 : vector<16x96xf32>
    %cst_72 = arith.constant 1.000000e+00 : f32
    %264 = vector.broadcast %cst_72 : f32 to vector<16x96xf32>
    %265 = arith.addf %264, %263 : vector<16x96xf32>
    %266 = arith.divf %264, %265 : vector<16x96xf32>
    %267 = vector.extract_strided_slice %260 {offsets = [0, 96], sizes = [16, 32], strides = [1, 1]} : vector<16x128xf32> to vector<16x32xf32>
    %268 = math.tanh %267 : vector<16x32xf32>
    %269 = vector.extract_strided_slice %266 {offsets = [0, 32], sizes = [16, 32], strides = [1, 1]} : vector<16x96xf32> to vector<16x32xf32>
    %270 = arith.mulf %269, %240 : vector<16x32xf32>
    %271 = vector.extract_strided_slice %266 {offsets = [0, 0], sizes = [16, 32], strides = [1, 1]} : vector<16x96xf32> to vector<16x32xf32>
    %272 = arith.mulf %271, %268 : vector<16x32xf32>
    %273 = arith.addf %270, %272 : vector<16x32xf32>
    %274 = vector.extract_strided_slice %266 {offsets = [0, 64], sizes = [16, 32], strides = [1, 1]} : vector<16x96xf32> to vector<16x32xf32>
    %275 = math.tanh %273 : vector<16x32xf32>
    %276 = arith.mulf %274, %275 : vector<16x32xf32>
    %277 = math.tanh %276 : vector<16x32xf32>
    %278 = arith.mulf %277, %16 : vector<16x32xf32>
    %cst_73 = arith.constant dense<0.000000e+00> : vector<16xf32>
    %279 = vector.multi_reduction <add>, %278, %cst_73 [1] : vector<16x32xf32> to vector<16xf32>
    %280 = vector.shape_cast %279 : vector<16xf32> to vector<16x1xf32>
    %281 = vector.extract_strided_slice %280 {offsets = [0, 0], sizes = [8, 1], strides = [1, 1]} : vector<16x1xf32> to vector<8x1xf32>
    %282 = vector.extract_strided_slice %280 {offsets = [8, 0], sizes = [8, 1], strides = [1, 1]} : vector<16x1xf32> to vector<8x1xf32>
    %283 = arith.addf %50, %282 : vector<8x1xf32>
    %284 = arith.addf %83, %249 : vector<8x1xf32>
    %285 = arith.addf %116, %216 : vector<8x1xf32>
    %286 = arith.addf %149, %183 : vector<8x1xf32>
    %287 = arith.addf %182, %150 : vector<8x1xf32>
    %288 = arith.addf %215, %117 : vector<8x1xf32>
    %289 = arith.addf %248, %84 : vector<8x1xf32>
    %290 = arith.addf %281, %51 : vector<8x1xf32>
    %291 = arith.maximumf %283, %284 : vector<8x1xf32>
    %292 = arith.maximumf %291, %285 : vector<8x1xf32>
    %293 = arith.maximumf %292, %286 : vector<8x1xf32>
    %294 = arith.maximumf %293, %287 : vector<8x1xf32>
    %295 = arith.maximumf %294, %288 : vector<8x1xf32>
    %296 = arith.maximumf %295, %289 : vector<8x1xf32>
    %297 = arith.maximumf %296, %290 : vector<8x1xf32>
    %298 = arith.subf %283, %297 : vector<8x1xf32>
    %299 = math.exp %298 : vector<8x1xf32>
    %300 = arith.subf %284, %297 : vector<8x1xf32>
    %301 = math.exp %300 : vector<8x1xf32>
    %302 = arith.subf %285, %297 : vector<8x1xf32>
    %303 = math.exp %302 : vector<8x1xf32>
    %304 = arith.subf %286, %297 : vector<8x1xf32>
    %305 = math.exp %304 : vector<8x1xf32>
    %306 = arith.subf %287, %297 : vector<8x1xf32>
    %307 = math.exp %306 : vector<8x1xf32>
    %308 = arith.subf %288, %297 : vector<8x1xf32>
    %309 = math.exp %308 : vector<8x1xf32>
    %310 = arith.subf %289, %297 : vector<8x1xf32>
    %311 = math.exp %310 : vector<8x1xf32>
    %312 = arith.subf %290, %297 : vector<8x1xf32>
    %313 = math.exp %312 : vector<8x1xf32>
    %314 = arith.addf %299, %301 : vector<8x1xf32>
    %315 = arith.addf %314, %303 : vector<8x1xf32>
    %316 = arith.addf %315, %305 : vector<8x1xf32>
    %317 = arith.addf %316, %307 : vector<8x1xf32>
    %318 = arith.addf %317, %309 : vector<8x1xf32>
    %319 = arith.addf %318, %311 : vector<8x1xf32>
    %320 = arith.addf %319, %313 : vector<8x1xf32>
    %321 = tpu.reciprocal %320 {approx = true} : vector<8x1xf32> -> vector<8x1xf32>
    %322 = arith.mulf %299, %321 : vector<8x1xf32>
    %323 = arith.mulf %301, %321 : vector<8x1xf32>
    %324 = arith.mulf %303, %321 : vector<8x1xf32>
    %325 = arith.mulf %305, %321 : vector<8x1xf32>
    %326 = arith.mulf %307, %321 : vector<8x1xf32>
    %327 = arith.mulf %309, %321 : vector<8x1xf32>
    %328 = arith.mulf %311, %321 : vector<8x1xf32>
    %329 = arith.mulf %313, %321 : vector<8x1xf32>
    %cst_74 = arith.constant 0.000000e+00 : f32
    %330 = vector.broadcast %cst_74 : f32 to vector<16x32xf32>
    %331 = tpu.concatenate %322, %329 in 0 : vector<8x1xf32>, vector<8x1xf32> -> vector<16x1xf32>
    %332 = vector.broadcast %331 : vector<16x1xf32> to vector<16x32xf32>
    %333 = arith.mulf %332, %45 : vector<16x32xf32>
    %334 = arith.addf %330, %333 : vector<16x32xf32>
    %335 = tpu.concatenate %323, %328 in 0 : vector<8x1xf32>, vector<8x1xf32> -> vector<16x1xf32>
    %336 = vector.broadcast %335 : vector<16x1xf32> to vector<16x32xf32>
    %337 = arith.mulf %336, %78 : vector<16x32xf32>
    %338 = arith.addf %334, %337 : vector<16x32xf32>
    %339 = tpu.concatenate %324, %327 in 0 : vector<8x1xf32>, vector<8x1xf32> -> vector<16x1xf32>
    %340 = vector.broadcast %339 : vector<16x1xf32> to vector<16x32xf32>
    %341 = arith.mulf %340, %111 : vector<16x32xf32>
    %342 = arith.addf %338, %341 : vector<16x32xf32>
    %343 = tpu.concatenate %325, %326 in 0 : vector<8x1xf32>, vector<8x1xf32> -> vector<16x1xf32>
    %344 = vector.broadcast %343 : vector<16x1xf32> to vector<16x32xf32>
    %345 = arith.mulf %344, %144 : vector<16x32xf32>
    %346 = arith.addf %342, %345 : vector<16x32xf32>
    %347 = tpu.concatenate %326, %325 in 0 : vector<8x1xf32>, vector<8x1xf32> -> vector<16x1xf32>
    %348 = vector.broadcast %347 : vector<16x1xf32> to vector<16x32xf32>
    %349 = arith.mulf %348, %177 : vector<16x32xf32>
    %350 = arith.addf %346, %349 : vector<16x32xf32>
    %351 = tpu.concatenate %327, %324 in 0 : vector<8x1xf32>, vector<8x1xf32> -> vector<16x1xf32>
    %352 = vector.broadcast %351 : vector<16x1xf32> to vector<16x32xf32>
    %353 = arith.mulf %352, %210 : vector<16x32xf32>
    %354 = arith.addf %350, %353 : vector<16x32xf32>
    %355 = tpu.concatenate %328, %323 in 0 : vector<8x1xf32>, vector<8x1xf32> -> vector<16x1xf32>
    %356 = vector.broadcast %355 : vector<16x1xf32> to vector<16x32xf32>
    %357 = arith.mulf %356, %243 : vector<16x32xf32>
    %358 = arith.addf %354, %357 : vector<16x32xf32>
    %359 = tpu.concatenate %329, %322 in 0 : vector<8x1xf32>, vector<8x1xf32> -> vector<16x1xf32>
    %360 = vector.broadcast %359 : vector<16x1xf32> to vector<16x32xf32>
    %361 = arith.mulf %360, %276 : vector<16x32xf32>
    %362 = arith.addf %358, %361 : vector<16x32xf32>
    %cst_75 = arith.constant 0.000000e+00 : f32
    %363 = vector.broadcast %cst_75 : f32 to vector<16x32xf32>
    %364 = arith.maximumf %362, %363 : vector<16x32xf32>
    %365 = vector.extract_strided_slice %364 {offsets = [0, 0], sizes = [8, 32], strides = [1, 1]} : vector<16x32xf32> to vector<8x32xf32>
    %366 = arith.truncf %365 : vector<8x32xf32> to vector<8x32xbf16>
    %c0_76 = arith.constant 0 : index
    %c0_77 = arith.constant 0 : index
    %367 = vector.load %arg7[%c0_76, %c0_77] : memref<64x64xbf16, #tpu.memory_space<vmem>>, vector<32x64xbf16>
    %cst_78 = arith.constant dense<0.000000e+00> : vector<8x64xf32>
    %368 = tpu.matmul %366, %367, %cst_78 {dimension_numbers = #tpu.dot_dimension_numbers<[1], [0], [0], [1], [0, 0, 1, 1], [], []>} : vector<8x32xbf16>, vector<32x64xbf16>, vector<8x64xf32> -> vector<8x64xf32>
    %369 = vector.extract_strided_slice %364 {offsets = [8, 0], sizes = [8, 32], strides = [1, 1]} : vector<16x32xf32> to vector<8x32xf32>
    %370 = arith.truncf %369 : vector<8x32xf32> to vector<8x32xbf16>
    %c32_79 = arith.constant 32 : index
    %c0_80 = arith.constant 0 : index
    %371 = vector.load %arg7[%c32_79, %c0_80] : memref<64x64xbf16, #tpu.memory_space<vmem>>, vector<32x64xbf16>
    %cst_81 = arith.constant dense<0.000000e+00> : vector<8x64xf32>
    %372 = tpu.matmul %370, %371, %cst_81 {dimension_numbers = #tpu.dot_dimension_numbers<[1], [0], [0], [1], [0, 0, 1, 1], [], []>} : vector<8x32xbf16>, vector<32x64xbf16>, vector<8x64xf32> -> vector<8x64xf32>
    %373 = arith.addf %368, %372 : vector<8x64xf32>
    %c0_82 = arith.constant 0 : index
    %c0_83 = arith.constant 0 : index
    %374 = vector.load %arg8[%c0_82, %c0_83] : memref<1x64xf32, #tpu.memory_space<vmem>>, vector<1x64xf32>
    %375 = vector.broadcast %374 : vector<1x64xf32> to vector<8x64xf32>
    %376 = arith.addf %373, %375 : vector<8x64xf32>
    %377 = arith.truncf %376 : vector<8x64xf32> to vector<8x64xbf16>
    %c0_84 = arith.constant 0 : index
    %c0_85 = arith.constant 0 : index
    %378 = vector.load %arg9[%c0_84, %c0_85] : memref<64x4xbf16, #tpu.memory_space<vmem>>, vector<64x4xbf16>
    %cst_86 = arith.constant dense<0.000000e+00> : vector<8x4xf32>
    %379 = tpu.matmul %377, %378, %cst_86 {dimension_numbers = #tpu.dot_dimension_numbers<[1], [0], [0], [1], [0, 0, 1, 1], [], []>} : vector<8x64xbf16>, vector<64x4xbf16>, vector<8x4xf32> -> vector<8x4xf32>
    %c0_87 = arith.constant 0 : index
    %c0_88 = arith.constant 0 : index
    %380 = vector.load %arg10[%c0_87, %c0_88] : memref<1x4xf32, #tpu.memory_space<vmem>>, vector<1x4xf32>
    %381 = vector.broadcast %380 : vector<1x4xf32> to vector<8x4xf32>
    %382 = arith.addf %379, %381 : vector<8x4xf32>
    %c0_89 = arith.constant 0 : index
    %c0_90 = arith.constant 0 : index
    %383 = vector.load %arg11[%c0_89, %c0_90] : memref<8x4xf32, #tpu.memory_space<vmem>>, vector<8x4xf32>
    tpu.vector_store %arg11[%c0_89, %c0_90], %382 {strides = array<i32>} : memref<8x4xf32, #tpu.memory_space<vmem>>, vector<8x4xf32>,
    return
  }
  func.func @transform_0(%arg0: i32) -> (i32, i32, i32) {
    %c0_i32 = arith.constant 0 : i32
    %c0_i32_0 = arith.constant 0 : i32
    %c0_i32_1 = arith.constant 0 : i32
    return %arg0, %c0_i32, %c0_i32_0 : i32, i32, i32
  }
  func.func @transform_1(%arg0: i32) -> (i32, i32) {
    %c0_i32 = arith.constant 0 : i32
    %c0_i32_0 = arith.constant 0 : i32
    %c0_i32_1 = arith.constant 0 : i32
    return %c0_i32, %c0_i32_0 : i32, i32
  }
  func.func @transform_2(%arg0: i32) -> (i32, i32) {
    %c0_i32 = arith.constant 0 : i32
    %c0_i32_0 = arith.constant 0 : i32
    %c0_i32_1 = arith.constant 0 : i32
    return %c0_i32, %c0_i32_0 : i32, i32
  }
  func.func @transform_3(%arg0: i32) -> (i32, i32) {
    %c0_i32 = arith.constant 0 : i32
    %c0_i32_0 = arith.constant 0 : i32
    %c0_i32_1 = arith.constant 0 : i32
    return %c0_i32, %c0_i32_0 : i32, i32
  }
  func.func @transform_4(%arg0: i32) -> (i32, i32) {
    %c0_i32 = arith.constant 0 : i32
    %c0_i32_0 = arith.constant 0 : i32
    %c0_i32_1 = arith.constant 0 : i32
    return %c0_i32, %c0_i32_0 : i32, i32
  }
  func.func @transform_5(%arg0: i32) -> (i32, i32) {
    %c0_i32 = arith.constant 0 : i32
    %c0_i32_0 = arith.constant 0 : i32
    %c0_i32_1 = arith.constant 0 : i32
    return %c0_i32, %c0_i32_0 : i32, i32
  }
  func.func @transform_6(%arg0: i32) -> (i32, i32) {
    %c0_i32 = arith.constant 0 : i32
    %c0_i32_0 = arith.constant 0 : i32
    %c0_i32_1 = arith.constant 0 : i32
    return %c0_i32, %c0_i32_0 : i32, i32
  }
  func.func @transform_7(%arg0: i32) -> (i32, i32) {
    %c0_i32 = arith.constant 0 : i32
    %c0_i32_0 = arith.constant 0 : i32
    %c0_i32_1 = arith.constant 0 : i32
    return %c0_i32, %c0_i32_0 : i32, i32
  }
  func.func @transform_8(%arg0: i32) -> (i32, i32) {
    %c0_i32 = arith.constant 0 : i32
    %c0_i32_0 = arith.constant 0 : i32
    %c0_i32_1 = arith.constant 0 : i32
    return %c0_i32, %c0_i32_0 : i32, i32
  }
  func.func @transform_9(%arg0: i32) -> (i32, i32) {
    %c0_i32 = arith.constant 0 : i32
    %c0_i32_0 = arith.constant 0 : i32
    %c0_i32_1 = arith.constant 0 : i32
    return %c0_i32, %c0_i32_0 : i32, i32
  }
  func.func @transform_10(%arg0: i32) -> (i32, i32) {
    %c0_i32 = arith.constant 0 : i32
    %c0_i32_0 = arith.constant 0 : i32
    return %arg0, %c0_i32 : i32, i32
  }
}

</mosaic_0001>

<llo_original>
// kernel: text_lstm_attention_forward.1
$region0: #{text_lstm_attention_forward.1}
  #allocation0 [shape = 'u32[]', space=smem, size = 0x4, offset = 0x4, fixed_abs, tag = 'smem constant byte address 0x4 - core index']
  #allocation1 [shape = 'u32[144,128]{1,0:T(1,128)}', space=vmem, size = 0x12000, scoped, tag = 'internal scratch']
  #allocation2 [shape = 'f32[64,256]{1,0:T(8,128)}', space=vmem, size = 0x10000, scoped, tag = 'scratch operand']
  %s0 = inlined_call_operand.vmem [shape: bf16[1,64,32], index: 0, kind: input, shape index: {}]
  %s1 = inlined_call_operand.vmem [shape: bf16[32,256], index: 1, kind: input, shape index: {}]
  %s2 = inlined_call_operand.vmem [shape: f32[1,256], index: 2, kind: input, shape index: {}]
  %s3 = inlined_call_operand.vmem [shape: bf16[32,128], index: 3, kind: input, shape index: {}]
  %s4 = inlined_call_operand.vmem [shape: bf16[32,128], index: 4, kind: input, shape index: {}]
  %s5 = inlined_call_operand.vmem [shape: f32[1,64], index: 5, kind: input, shape index: {}]
  %s6 = inlined_call_operand.vmem [shape: bf16[64,64], index: 6, kind: input, shape index: {}]
  %s7 = inlined_call_operand.vmem [shape: f32[1,64], index: 7, kind: input, shape index: {}]
  %s8 = inlined_call_operand.vmem [shape: bf16[64,4], index: 8, kind: input, shape index: {}]
  %s9 = inlined_call_operand.vmem [shape: f32[1,4], index: 9, kind: input, shape index: {}]
  %s10 = inlined_call_operand.vmem [shape: f32[8,4], index: 10, kind: output, shape index: {}]
  %s11 = sld [smem:[#allocation0]]
  $region50: #{text_lstm_attention_forward.1} parent=0
    _
  %s13 = ssub.s32 1, %s11
  %s14 = scalar_select 0, %s13, %s11
  // Predicated region
  $region2: #{text_lstm_attention_forward.1} parent=0 // pred_check
    _
  $region3: #{text_lstm_attention_forward.1} parent=0 // pred_check_branch
    %16 = sbr.rel (0) target = $region5
  $region4: #{text_lstm_attention_forward.1} parent=0 // pred_region
    _
  $region5: #{text_lstm_attention_forward.1} parent=0 // pred_fallthru
    _
  // Predicated region
  $region6: #{text_lstm_attention_forward.1} parent=0 // pred_check
    _
  $region7: #{text_lstm_attention_forward.1} parent=0 // pred_check_branch
    %18 = sbr.rel (0) target = $region9
  $region8: #{text_lstm_attention_forward.1} parent=0 // pred_region
    _
  $region9: #{text_lstm_attention_forward.1} parent=0 // pred_fallthru
    _
  // Predicated region
  $region10: #{text_lstm_attention_forward.1} parent=0 // pred_check
    _
  $region11: #{text_lstm_attention_forward.1} parent=0 // pred_check_branch
    %20 = sbr.rel (0) target = $region13
  $region12: #{text_lstm_attention_forward.1} parent=0 // pred_region
    _
  $region13: #{text_lstm_attention_forward.1} parent=0 // pred_fallthru
    _
  // Predicated region
  $region14: #{text_lstm_attention_forward.1} parent=0 // pred_check
    _
  $region15: #{text_lstm_attention_forward.1} parent=0 // pred_check_branch
    %22 = sbr.rel (0) target = $region17
  $region16: #{text_lstm_attention_forward.1} parent=0 // pred_region
    _
  $region17: #{text_lstm_attention_forward.1} parent=0 // pred_fallthru
    _
  // Predicated region
  $region18: #{text_lstm_attention_forward.1} parent=0 // pred_check
    _
  $region19: #{text_lstm_attention_forward.1} parent=0 // pred_check_branch
    %24 = sbr.rel (0) target = $region21
  $region20: #{text_lstm_attention_forward.1} parent=0 // pred_region
    _
  $region21: #{text_lstm_attention_forward.1} parent=0 // pred_fallthru
    _
  // Predicated region
  $region22: #{text_lstm_attention_forward.1} parent=0 // pred_check
    _
  $region23: #{text_lstm_attention_forward.1} parent=0 // pred_check_branch
    %26 = sbr.rel (0) target = $region25
  $region24: #{text_lstm_attention_forward.1} parent=0 // pred_region
    _
  $region25: #{text_lstm_attention_forward.1} parent=0 // pred_fallthru
    _
  // Predicated region
  $region26: #{text_lstm_attention_forward.1} parent=0 // pred_check
    _
  $region27: #{text_lstm_attention_forward.1} parent=0 // pred_check_branch
    %28 = sbr.rel (0) target = $region29
  $region28: #{text_lstm_attention_forward.1} parent=0 // pred_region
    _
  $region29: #{text_lstm_attention_forward.1} parent=0 // pred_fallthru
    _
  // Predicated region
  $region30: #{text_lstm_attention_forward.1} parent=0 // pred_check
    _
  $region31: #{text_lstm_attention_forward.1} parent=0 // pred_check_branch
    %30 = sbr.rel (0) target = $region33
  $region32: #{text_lstm_attention_forward.1} parent=0 // pred_region
    _
  $region33: #{text_lstm_attention_forward.1} parent=0 // pred_fallthru
    _
  // Predicated region
  $region34: #{text_lstm_attention_forward.1} parent=0 // pred_check
    _
  $region35: #{text_lstm_attention_forward.1} parent=0 // pred_check_branch
    %32 = sbr.rel (0) target = $region37
  $region36: #{text_lstm_attention_forward.1} parent=0 // pred_region
    _
  $region37: #{text_lstm_attention_forward.1} parent=0 // pred_fallthru
    _
  // Predicated region
  $region38: #{text_lstm_attention_forward.1} parent=0 // pred_check
    _
  $region39: #{text_lstm_attention_forward.1} parent=0 // pred_check_branch
    %34 = sbr.rel (0) target = $region41
  $region40: #{text_lstm_attention_forward.1} parent=0 // pred_region
    _
  $region41: #{text_lstm_attention_forward.1} parent=0 // pred_fallthru
    _
  %v36 = vld [vmem:[%s0] sm:$0xf]
  %v37 = vld [vmem:[%s0 + $0x4] sm:$0xf]
  %v38 = vld [vmem:[%s0 + $0x8] sm:$0xf]
  %v39 = vld [vmem:[%s0 + $0xc] sm:$0xf]
  %v40 = vld [vmem:[%s0 + $0x10] sm:$0xf]
  %v41 = vld [vmem:[%s0 + $0x14] sm:$0xf]
  %v42 = vld [vmem:[%s0 + $0x18] sm:$0xf]
  %v43 = vld [vmem:[%s0 + $0x1c] sm:$0xf]
  %v44 = vld [vmem:[%s1] sm:$0xff]
  %v45 = vld [vmem:[%s1 + $0x8] sm:$0xff]
  %v46 = vld [vmem:[%s1 + $0x10] sm:$0xff]
  %v47 = vld [vmem:[%s1 + $0x18] sm:$0xff]
  %v48 = vld [vmem:[%s2] sm:$0x3]
  %v50 = vlaneseq
  %v51 = vshrl.u32 %v50, 7
  %v52 = vsub.s32 0, %v51
  %v53 = vrot.slane %v48, %v52
  %v54 = vlaneseq
  %v55 = vshrl.u32 %v54, 7
  %v56 = vsub.s32 1, %v55
  %v57 = vrot.slane %v48, %v56
  %v68 = vunpack.c.l.b16 %v36
  %v69 = vunpack.c.l.b16 %v37
  %v70 = vunpack.c.l.b16 %v38
  %v71 = vunpack.c.l.b16 %v39
  %v72 = vunpack.c.l.b16 %v40
  %v73 = vunpack.c.l.b16 %v41
  %v74 = vunpack.c.l.b16 %v42
  %v75 = vunpack.c.l.b16 %v43
  %v76 = vpack.c.b16 %v69, %v68
  %v77 = vpack.c.b16 %v71, %v70
  %v78 = vpack.c.b16 %v73, %v72
  %v79 = vpack.c.b16 %v75, %v74
  %v84 = vunpack.c.l.b16 %v44
  %v85 = vunpack.c.h.b16 %v44
  %v86 = vunpack.c.l.b16 %v45
  %v87 = vunpack.c.h.b16 %v45
  %v88 = vunpack.c.l.b16 %v46
  %v89 = vunpack.c.h.b16 %v46
  %v90 = vunpack.c.l.b16 %v47
  %v91 = vunpack.c.h.b16 %v47
  %v92 = vpack.c.b16 %v86, %v84
  %v93 = vpack.c.b16 %v87, %v85
  %v94 = vpack.c.b16 %v90, %v88
  %v95 = vpack.c.b16 %v91, %v89
  %vm100 = vcmask 261120
  %v102 = vsel %vm100, %v76, 0
  %v105 = vsel %vm100, %v77, 0
  %v108 = vsel %vm100, %v78, 0
  %v111 = vsel %vm100, %v79, 0
  %113 = vmatprep.subr.bf16.mxu0 %v93
  %114 = vmatpush1.bf16.msra.mxu0 %v92
  %115 = vmatprep.subr.bf16.mxu0 %v95
  %116 = vmatpush1.bf16.msra.mxu0 %v94
  %117 = vmatprep.subr.bf16.mxu0 0
  %118 = vmatpush1.bf16.msra.mxu0 0
  %119 = vmatprep.subr.bf16.mxu0 0
  %120 = vmatpush1.bf16.msra.mxu0 0
  %121 = vmatprep.subr.bf16.mxu0 0
  %122 = vmatpush1.bf16.msra.mxu0 0
  %123 = vmatprep.subr.bf16.mxu0 0
  %124 = vmatpush1.bf16.msra.mxu0 0
  %125 = vmatprep.subr.bf16.mxu0 0
  %126 = vmatpush1.bf16.msra.mxu0 0
  %127 = vmatprep.subr.bf16.mxu0 0
  %128 = vmatpush1.bf16.msra.mxu0 0
  %129 = vmatprep.subr.bf16.mxu0 0
  %130 = vmatpush1.bf16.msra.mxu0 0
  %131 = vmatprep.subr.bf16.mxu0 0
  %132 = vmatpush1.bf16.msra.mxu0 0
  %133 = vmatprep.subr.bf16.mxu0 0
  %134 = vmatpush1.bf16.msra.mxu0 0
  %135 = vmatprep.subr.bf16.mxu0 0
  %136 = vmatpush1.bf16.msra.mxu0 0
  %137 = vmatprep.subr.bf16.mxu0 0
  %138 = vmatpush1.bf16.msra.mxu0 0
  %139 = vmatprep.subr.bf16.mxu0 0
  %140 = vmatpush1.bf16.msra.mxu0 0
  %141 = vmatprep.subr.bf16.mxu0 0
  %142 = vmatpush1.bf16.msra.mxu0 0
  %143 = vmatprep.subr.bf16.mxu0 0
  %144 = vmatpush1.bf16.msra.mxu0 0
  %145 = vmatprep.mubr.bf16.mxu0 0
  %146 = vmatmul.mubr.bf16.gmra.mrb[0].mxu0 %v102
  %v147 = vpop.f32.mrb[0].mxu0
  %v148 = vadd.f32 %v53, %v147
  %v149 = vpop.f32.mrb[0].mxu0
  %v150 = vadd.f32 %v57, %v149
  %v151 = vpop.f32.mrb[0].mxu0
  %v152 = vadd.f32 %v53, %v151
  %v153 = vpop.f32.mrb[0].mxu0
  %v154 = vadd.f32 %v57, %v153
  %155 = vmatprep.mubr.bf16.mxu0 0
  %156 = vmatmul.mubr.bf16.gmra.mrb[0].mxu0 %v105
  %v157 = vpop.f32.mrb[0].mxu0
  %v158 = vadd.f32 %v53, %v157
  %v159 = vpop.f32.mrb[0].mxu0
  %v160 = vadd.f32 %v57, %v159
  %v161 = vpop.f32.mrb[0].mxu0
  %v162 = vadd.f32 %v53, %v161
  %v163 = vpop.f32.mrb[0].mxu0
  %v164 = vadd.f32 %v57, %v163
  %165 = vmatprep.mubr.bf16.mxu0 0
  %166 = vmatmul.mubr.bf16.gmra.mrb[0].mxu0 %v108
  %v167 = vpop.f32.mrb[0].mxu0
  %v168 = vadd.f32 %v53, %v167
  %v169 = vpop.f32.mrb[0].mxu0
  %v170 = vadd.f32 %v57, %v169
  %v171 = vpop.f32.mrb[0].mxu0
  %v172 = vadd.f32 %v53, %v171
  %v173 = vpop.f32.mrb[0].mxu0
  %v174 = vadd.f32 %v57, %v173
  %175 = vmatprep.mubr.bf16.mxu0 0
  %176 = vmatmul.mubr.bf16.gmra.mrb[0].mxu0 %v111
  %v177 = vpop.f32.mrb[0].mxu0
  %v178 = vadd.f32 %v53, %v177
  %v179 = vpop.f32.mrb[0].mxu0
  %v180 = vadd.f32 %v57, %v179
  %v181 = vpop.f32.mrb[0].mxu0
  %v182 = vadd.f32 %v53, %v181
  %v183 = vpop.f32.mrb[0].mxu0
  %v184 = vadd.f32 %v57, %v183
  %185 = vdwg.mxu0
  %186 = vst [vmem:[#allocation2] sm:$0xff] %v148
  %187 = vst [vmem:[#allocation2 + $0x8] sm:$0xff] %v150
  %188 = vst [vmem:[#allocation2 + $0x10] sm:$0xff] %v152
  %189 = vst [vmem:[#allocation2 + $0x18] sm:$0xff] %v154
  %190 = vst [vmem:[#allocation2 + $0x20] sm:$0xff] %v158
  %191 = vst [vmem:[#allocation2 + $0x28] sm:$0xff] %v160
  %192 = vst [vmem:[#allocation2 + $0x30] sm:$0xff] %v162
  %193 = vst [vmem:[#allocation2 + $0x38] sm:$0xff] %v164
  %194 = vst [vmem:[#allocation2 + $0x40] sm:$0xff] %v168
  %195 = vst [vmem:[#allocation2 + $0x48] sm:$0xff] %v170
  %196 = vst [vmem:[#allocation2 + $0x50] sm:$0xff] %v172
  %197 = vst [vmem:[#allocation2 + $0x58] sm:$0xff] %v174
  %198 = vst [vmem:[#allocation2 + $0x60] sm:$0xff] %v178
  %199 = vst [vmem:[#allocation2 + $0x68] sm:$0xff] %v180
  %200 = vst [vmem:[#allocation2 + $0x70] sm:$0xff] %v182
  %201 = vst [vmem:[#allocation2 + $0x78] sm:$0xff] %v184
  %v202 = vld [vmem:[%s3] sm:$0xf]
  %v203 = vld [vmem:[%s3 + $0x4] sm:$0xf]
  %v204 = vld [vmem:[%s3 + $0x8] sm:$0xf]
  %v205 = vld [vmem:[%s3 + $0xc] sm:$0xf]
  %v206 = vld [vmem:[%s4] sm:$0xf]
  %v207 = vld [vmem:[%s4 + $0x4] sm:$0xf]
  %v208 = vld [vmem:[%s4 + $0x8] sm:$0xf]
  %v209 = vld [vmem:[%s4 + $0xc] sm:$0xf]
  %v210 = vld [vmem:[%s5] sm:$0x1]
  %v212 = vlaneseq
  %v213 = vshrl.u32 %v212, 7
  %v214 = vsub.s32 0, %v213
  %v215 = vrot.slane %v210, %v214
  %216 = vrot.lane.b32.xlu0 %v215, 96
  %v217 = vpop.permute.xlu0 %216
  %v218 = vld [vmem:[#allocation2] sm:$0xff]
  %v223 = vunpack.c.l.b16 %v202
  %v224 = vunpack.c.l.b16 %v203
  %v225 = vunpack.c.l.b16 %v204
  %v226 = vunpack.c.l.b16 %v205
  %v227 = vpack.c.b16 %v224, %v223
  %v228 = vpack.c.b16 %v226, %v225
  %v232 = vsel %vm100, 0, 0
  %234 = vmatprep.subr.bf16.mxu0 0
  %235 = vmatpush1.bf16.msra.mxu0 %v227
  %236 = vmatprep.subr.bf16.mxu0 0
  %237 = vmatpush1.bf16.msra.mxu0 %v228
  %238 = vmatprep.subr.bf16.mxu0 0
  %239 = vmatpush1.bf16.msra.mxu0 0
  %240 = vmatprep.subr.bf16.mxu0 0
  %241 = vmatpush1.bf16.msra.mxu0 0
  %242 = vmatprep.subr.bf16.mxu0 0
  %243 = vmatpush1.bf16.msra.mxu0 0
  %244 = vmatprep.subr.bf16.mxu0 0
  %245 = vmatpush1.bf16.msra.mxu0 0
  %246 = vmatprep.subr.bf16.mxu0 0
  %247 = vmatpush1.bf16.msra.mxu0 0
  %248 = vmatprep.subr.bf16.mxu0 0
  %249 = vmatpush1.bf16.msra.mxu0 0
  %250 = vmatprep.subr.bf16.mxu0 0
  %251 = vmatpush1.bf16.msra.mxu0 0
  %252 = vmatprep.subr.bf16.mxu0 0
  %253 = vmatpush1.bf16.msra.mxu0 0
  %254 = vmatprep.subr.bf16.mxu0 0
  %255 = vmatpush1.bf16.msra.mxu0 0
  %256 = vmatprep.subr.bf16.mxu0 0
  %257 = vmatpush1.bf16.msra.mxu0 0
  %258 = vmatprep.subr.bf16.mxu0 0
  %259 = vmatpush1.bf16.msra.mxu0 0
  %260 = vmatprep.subr.bf16.mxu0 0
  %261 = vmatpush1.bf16.msra.mxu0 0
  %262 = vmatprep.subr.bf16.mxu0 0
  %263 = vmatpush1.bf16.msra.mxu0 0
  %264 = vmatprep.subr.bf16.mxu0 0
  %265 = vmatpush1.bf16.msra.mxu0 0
  %266 = vmatprep.mubr.bf16.mxu0 0
  %267 = vmatmul.mubr.bf16.gmra.mrb[0].mxu0 %v232
  %v268 = vpop.f32.mrb[0].mxu0
  %v269 = vadd.f32 0.0, %v268
  %v270 = vpop.f32.mrb[0].mxu0
  %v271 = vpop.f32.mrb[0].mxu0
  %v272 = vpop.f32.mrb[0].mxu0
  %273 = vdwg.mxu0
  %v274 = vadd.f32 %v218, %v269
  %v275 = vld [vmem:[#allocation2 + $0x78] sm:$0xff]
  %v280 = vunpack.c.l.b16 %v206
  %v281 = vunpack.c.l.b16 %v207
  %v282 = vunpack.c.l.b16 %v208
  %v283 = vunpack.c.l.b16 %v209
  %v284 = vpack.c.b16 %v281, %v280
  %v285 = vpack.c.b16 %v283, %v282
  %288 = vmatprep.subr.bf16.mxu0 0
  %289 = vmatpush1.bf16.msra.mxu0 %v284
  %290 = vmatprep.subr.bf16.mxu0 0
  %291 = vmatpush1.bf16.msra.mxu0 %v285
  %292 = vmatprep.subr.bf16.mxu0 0
  %293 = vmatpush1.bf16.msra.mxu0 0
  %294 = vmatprep.subr.bf16.mxu0 0
  %295 = vmatpush1.bf16.msra.mxu0 0
  %296 = vmatprep.subr.bf16.mxu0 0
  %297 = vmatpush1.bf16.msra.mxu0 0
  %298 = vmatprep.subr.bf16.mxu0 0
  %299 = vmatpush1.bf16.msra.mxu0 0
  %300 = vmatprep.subr.bf16.mxu0 0
  %301 = vmatpush1.bf16.msra.mxu0 0
  %302 = vmatprep.subr.bf16.mxu0 0
  %303 = vmatpush1.bf16.msra.mxu0 0
  %304 = vmatprep.subr.bf16.mxu0 0
  %305 = vmatpush1.bf16.msra.mxu0 0
  %306 = vmatprep.subr.bf16.mxu0 0
  %307 = vmatpush1.bf16.msra.mxu0 0
  %308 = vmatprep.subr.bf16.mxu0 0
  %309 = vmatpush1.bf16.msra.mxu0 0
  %310 = vmatprep.subr.bf16.mxu0 0
  %311 = vmatpush1.bf16.msra.mxu0 0
  %312 = vmatprep.subr.bf16.mxu0 0
  %313 = vmatpush1.bf16.msra.mxu0 0
  %314 = vmatprep.subr.bf16.mxu0 0
  %315 = vmatpush1.bf16.msra.mxu0 0
  %316 = vmatprep.subr.bf16.mxu0 0
  %317 = vmatpush1.bf16.msra.mxu0 0
  %318 = vmatprep.subr.bf16.mxu0 0
  %319 = vmatpush1.bf16.msra.mxu0 0
  %320 = vmatprep.mubr.bf16.mxu0 0
  %321 = vmatmul.mubr.bf16.gmra.mrb[0].mxu0 %v232
  %v322 = vpop.f32.mrb[0].mxu0
  %v323 = vadd.f32 0.0, %v322
  %v324 = vpop.f32.mrb[0].mxu0
  %v325 = vpop.f32.mrb[0].mxu0
  %v326 = vpop.f32.mrb[0].mxu0
  %327 = vdwg.mxu0
  %v328 = vadd.f32 %v275, %v323
  %v329 = vxor.u32 %v274, 2147483648
  %v330 = vxor.u32 %v328, 2147483648
  %v331 = vmul.f32 %v329, 1.442695
  %v332 = vpow.pop %v331
  %v333 = vmul.f32 %v330, 1.442695
  %v334 = vpow.pop %v333
  %v335 = vadd.f32 %v332, 1.0
  %v336 = vadd.f32 %v334, 1.0
  %v337 = vrcp.pop %v335
  %v338 = vmul.f32 1.0, %v337
  %v339 = vrcp.pop %v336
  %v340 = vmul.f32 1.0, %v339
  %v341 = vtanh.pop %v274
  %v342 = vtanh.pop %v328
  %v343 = vmul.f32 %v338, 0.0
  %v344 = vmul.f32 %v340, 0.0
  %347 = vrot.lane.b32.xlu0 %v341, 32
  %v348 = vpop.permute.xlu0 %347
  %349 = vrot.lane.b32.xlu0 %v342, 32
  %v350 = vpop.permute.xlu0 %349
  %v353 = vmul.f32 %v338, %v348
  %v354 = vmul.f32 %v340, %v350
  %357 = vrot.lane.b32.xlu0 %v353, 32
  %v358 = vpop.permute.xlu0 %357
  %359 = vrot.lane.b32.xlu0 %v354, 32
  %v360 = vpop.permute.xlu0 %359
  %v363 = vadd.f32 %v343, %v358
  %v364 = vadd.f32 %v344, %v360
  %v365 = vtanh.pop %v363
  %v366 = vtanh.pop %v364
  %369 = vrot.lane.b32.xlu0 %v365, 32
  %v370 = vpop.permute.xlu0 %369
  %371 = vrot.lane.b32.xlu0 %v366, 32
  %v372 = vpop.permute.xlu0 %371
  %v375 = vmul.f32 %v338, %v370
  %v376 = vmul.f32 %v340, %v372
  %v377 = vtanh.pop %v375
  %v378 = vtanh.pop %v376
  %379 = vrot.lane.b32.xlu0 %v215, 64
  %v380 = vpop.permute.xlu0 %379
  %381 = vrot.lane.b32.xlu0 %v217, 64
  %v382 = vpop.permute.xlu0 %381
  %v385 = vmul.f32 %v377, %v380
  %v386 = vmul.f32 %v378, %v382
  %389 = vrot.lane.b32.xlu0 %v385, 64
  %v390 = vpop.permute.xlu0 %389
  %391 = vrot.lane.b32.xlu0 %v386, 64
  %v392 = vpop.permute.xlu0 %391
  %v395 = vsel %vm100, %v390, 0.0
  %396 = vadd.xlane.f32.xlu0 %v395
  %v397 = vpop.xlane.xlu0 %396
  %v398 = vsel %vm100, %v392, 0.0
  %399 = vadd.xlane.f32.xlu0 %v398
  %v400 = vpop.xlane.xlu0 %399
  %v401 = vld [vmem:[#allocation2 + $0x10] sm:$0xff]
  %v402 = vpack.c.bf16 %v375, %v375
  %404 = vrot.lane.b32.xlu0 %v402, 64
  %v405 = vpop.permute.xlu0 %404
  %v407 = vsel %vm100, %v405, 0
  %409 = vmatprep.subr.bf16.mxu0 0
  %410 = vmatpush1.bf16.msra.mxu0 %v227
  %411 = vmatprep.subr.bf16.mxu0 0
  %412 = vmatpush1.bf16.msra.mxu0 %v228
  %413 = vmatprep.subr.bf16.mxu0 0
  %414 = vmatpush1.bf16.msra.mxu0 0
  %415 = vmatprep.subr.bf16.mxu0 0
  %416 = vmatpush1.bf16.msra.mxu0 0
  %417 = vmatprep.subr.bf16.mxu0 0
  %418 = vmatpush1.bf16.msra.mxu0 0
  %419 = vmatprep.subr.bf16.mxu0 0
  %420 = vmatpush1.bf16.msra.mxu0 0
  %421 = vmatprep.subr.bf16.mxu0 0
  %422 = vmatpush1.bf16.msra.mxu0 0
  %423 = vmatprep.subr.bf16.mxu0 0
  %424 = vmatpush1.bf16.msra.mxu0 0
  %425 = vmatprep.subr.bf16.mxu0 0
  %426 = vmatpush1.bf16.msra.mxu0 0
  %427 = vmatprep.subr.bf16.mxu0 0
  %428 = vmatpush1.bf16.msra.mxu0 0
  %429 = vmatprep.subr.bf16.mxu0 0
  %430 = vmatpush1.bf16.msra.mxu0 0
  %431 = vmatprep.subr.bf16.mxu0 0
  %432 = vmatpush1.bf16.msra.mxu0 0
  %433 = vmatprep.subr.bf16.mxu0 0
  %434 = vmatpush1.bf16.msra.mxu0 0
  %435 = vmatprep.subr.bf16.mxu0 0
  %436 = vmatpush1.bf16.msra.mxu0 0
  %437 = vmatprep.subr.bf16.mxu0 0
  %438 = vmatpush1.bf16.msra.mxu0 0
  %439 = vmatprep.subr.bf16.mxu0 0
  %440 = vmatpush1.bf16.msra.mxu0 0
  %441 = vmatprep.mubr.bf16.mxu0 0
  %442 = vmatmul.mubr.bf16.gmra.mrb[0].mxu0 %v407
  %v443 = vpop.f32.mrb[0].mxu0
  %v444 = vadd.f32 0.0, %v443
  %v445 = vpop.f32.mrb[0].mxu0
  %v446 = vpop.f32.mrb[0].mxu0
  %v447 = vpop.f32.mrb[0].mxu0
  %448 = vdwg.mxu0
  %v449 = vadd.f32 %v401, %v444
  %v450 = vld [vmem:[#allocation2 + $0x68] sm:$0xff]
  %v451 = vpack.c.bf16 %v376, %v376
  %453 = vrot.lane.b32.xlu0 %v451, 64
  %v454 = vpop.permute.xlu0 %453
  %v456 = vsel %vm100, %v454, 0
  %458 = vmatprep.subr.bf16.mxu0 0
  %459 = vmatpush1.bf16.msra.mxu0 %v284
  %460 = vmatprep.subr.bf16.mxu0 0
  %461 = vmatpush1.bf16.msra.mxu0 %v285
  %462 = vmatprep.subr.bf16.mxu0 0
  %463 = vmatpush1.bf16.msra.mxu0 0
  %464 = vmatprep.subr.bf16.mxu0 0
  %465 = vmatpush1.bf16.msra.mxu0 0
  %466 = vmatprep.subr.bf16.mxu0 0
  %467 = vmatpush1.bf16.msra.mxu0 0
  %468 = vmatprep.subr.bf16.mxu0 0
  %469 = vmatpush1.bf16.msra.mxu0 0
  %470 = vmatprep.subr.bf16.mxu0 0
  %471 = vmatpush1.bf16.msra.mxu0 0
  %472 = vmatprep.subr.bf16.mxu0 0
  %473 = vmatpush1.bf16.msra.mxu0 0
  %474 = vmatprep.subr.bf16.mxu0 0
  %475 = vmatpush1.bf16.msra.mxu0 0
  %476 = vmatprep.subr.bf16.mxu0 0
  %477 = vmatpush1.bf16.msra.mxu0 0
  %478 = vmatprep.subr.bf16.mxu0 0
  %479 = vmatpush1.bf16.msra.mxu0 0
  %480 = vmatprep.subr.bf16.mxu0 0
  %481 = vmatpush1.bf16.msra.mxu0 0
  %482 = vmatprep.subr.bf16.mxu0 0
  %483 = vmatpush1.bf16.msra.mxu0 0
  %484 = vmatprep.subr.bf16.mxu0 0
  %485 = vmatpush1.bf16.msra.mxu0 0
  %486 = vmatprep.subr.bf16.mxu0 0
  %487 = vmatpush1.bf16.msra.mxu0 0
  %488 = vmatprep.subr.bf16.mxu0 0
  %489 = vmatpush1.bf16.msra.mxu0 0
  %490 = vmatprep.mubr.bf16.mxu0 0
  %491 = vmatmul.mubr.bf16.gmra.mrb[0].mxu0 %v456
  %v492 = vpop.f32.mrb[0].mxu0
  %v493 = vadd.f32 0.0, %v492
  %v494 = vpop.f32.mrb[0].mxu0
  %v495 = vpop.f32.mrb[0].mxu0
  %v496 = vpop.f32.mrb[0].mxu0
  %497 = vdwg.mxu0
  %v498 = vadd.f32 %v450, %v493
  %v499 = vxor.u32 %v449, 2147483648
  %v500 = vxor.u32 %v498, 2147483648
  %v501 = vmul.f32 %v499, 1.442695
  %v502 = vpow.pop %v501
  %v503 = vmul.f32 %v500, 1.442695
  %v504 = vpow.pop %v503
  %v505 = vadd.f32 %v502, 1.0
  %v506 = vadd.f32 %v504, 1.0
  %v507 = vrcp.pop %v505
  %v508 = vmul.f32 1.0, %v507
  %v509 = vrcp.pop %v506
  %v510 = vmul.f32 1.0, %v509
  %v511 = vtanh.pop %v449
  %v512 = vtanh.pop %v498
  %v513 = vmul.f32 %v508, %v363
  %v514 = vmul.f32 %v510, %v364
  %517 = vrot.lane.b32.xlu0 %v511, 32
  %v518 = vpop.permute.xlu0 %517
  %519 = vrot.lane.b32.xlu0 %v512, 32
  %v520 = vpop.permute.xlu0 %519
  %v523 = vmul.f32 %v508, %v518
  %v524 = vmul.f32 %v510, %v520
  %527 = vrot.lane.b32.xlu0 %v523, 32
  %v528 = vpop.permute.xlu0 %527
  %529 = vrot.lane.b32.xlu0 %v524, 32
  %v530 = vpop.permute.xlu0 %529
  %v533 = vadd.f32 %v513, %v528
  %v534 = vadd.f32 %v514, %v530
  %v535 = vtanh.pop %v533
  %v536 = vtanh.pop %v534
  %539 = vrot.lane.b32.xlu0 %v535, 32
  %v540 = vpop.permute.xlu0 %539
  %541 = vrot.lane.b32.xlu0 %v536, 32
  %v542 = vpop.permute.xlu0 %541
  %v545 = vmul.f32 %v508, %v540
  %v546 = vmul.f32 %v510, %v542
  %v547 = vtanh.pop %v545
  %v548 = vtanh.pop %v546
  %v549 = vmul.f32 %v547, %v380
  %v550 = vmul.f32 %v548, %v382
  %553 = vrot.lane.b32.xlu0 %v549, 64
  %v554 = vpop.permute.xlu0 %553
  %555 = vrot.lane.b32.xlu0 %v550, 64
  %v556 = vpop.permute.xlu0 %555
  %v559 = vsel %vm100, %v554, 0.0
  %560 = vadd.xlane.f32.xlu0 %v559
  %v561 = vpop.xlane.xlu0 %560
  %v562 = vsel %vm100, %v556, 0.0
  %563 = vadd.xlane.f32.xlu0 %v562
  %v564 = vpop.xlane.xlu0 %563
  %v565 = vld [vmem:[#allocation2 + $0x20] sm:$0xff]
  %v566 = vpack.c.bf16 %v545, %v545
  %568 = vrot.lane.b32.xlu0 %v566, 64
  %v569 = vpop.permute.xlu0 %568
  %v571 = vsel %vm100, %v569, 0
  %573 = vmatprep.subr.bf16.mxu0 0
  %574 = vmatpush1.bf16.msra.mxu0 %v227
  %575 = vmatprep.subr.bf16.mxu0 0
  %576 = vmatpush1.bf16.msra.mxu0 %v228
  %577 = vmatprep.subr.bf16.mxu0 0
  %578 = vmatpush1.bf16.msra.mxu0 0
  %579 = vmatprep.subr.bf16.mxu0 0
  %580 = vmatpush1.bf16.msra.mxu0 0
  %581 = vmatprep.subr.bf16.mxu0 0
  %582 = vmatpush1.bf16.msra.mxu0 0
  %583 = vmatprep.subr.bf16.mxu0 0
  %584 = vmatpush1.bf16.msra.mxu0 0
  %585 = vmatprep.subr.bf16.mxu0 0
  %586 = vmatpush1.bf16.msra.mxu0 0
  %587 = vmatprep.subr.bf16.mxu0 0
  %588 = vmatpush1.bf16.msra.mxu0 0
  %589 = vmatprep.subr.bf16.mxu0 0
  %590 = vmatpush1.bf16.msra.mxu0 0
  %591 = vmatprep.subr.bf16.mxu0 0
  %592 = vmatpush1.bf16.msra.mxu0 0
  %593 = vmatprep.subr.bf16.mxu0 0
  %594 = vmatpush1.bf16.msra.mxu0 0
  %595 = vmatprep.subr.bf16.mxu0 0
  %596 = vmatpush1.bf16.msra.mxu0 0
  %597 = vmatprep.subr.bf16.mxu0 0
  %598 = vmatpush1.bf16.msra.mxu0 0
  %599 = vmatprep.subr.bf16.mxu0 0
  %600 = vmatpush1.bf16.msra.mxu0 0
  %601 = vmatprep.subr.bf16.mxu0 0
  %602 = vmatpush1.bf16.msra.mxu0 0
  %603 = vmatprep.subr.bf16.mxu0 0
  %604 = vmatpush1.bf16.msra.mxu0 0
  %605 = vmatprep.mubr.bf16.mxu0 0
  %606 = vmatmul.mubr.bf16.gmra.mrb[0].mxu0 %v571
  %v607 = vpop.f32.mrb[0].mxu0
  %v608 = vadd.f32 0.0, %v607
  %v609 = vpop.f32.mrb[0].mxu0
  %v610 = vpop.f32.mrb[0].mxu0
  %v611 = vpop.f32.mrb[0].mxu0
  %612 = vdwg.mxu0
  %v613 = vadd.f32 %v565, %v608
  %v614 = vld [vmem:[#allocation2 + $0x58] sm:$0xff]
  %v615 = vpack.c.bf16 %v546, %v546
  %617 = vrot.lane.b32.xlu0 %v615, 64
  %v618 = vpop.permute.xlu0 %617
  %v620 = vsel %vm100, %v618, 0
  %622 = vmatprep.subr.bf16.mxu0 0
  %623 = vmatpush1.bf16.msra.mxu0 %v284
  %624 = vmatprep.subr.bf16.mxu0 0
  %625 = vmatpush1.bf16.msra.mxu0 %v285
  %626 = vmatprep.subr.bf16.mxu0 0
  %627 = vmatpush1.bf16.msra.mxu0 0
  %628 = vmatprep.subr.bf16.mxu0 0
  %629 = vmatpush1.bf16.msra.mxu0 0
  %630 = vmatprep.subr.bf16.mxu0 0
  %631 = vmatpush1.bf16.msra.mxu0 0
  %632 = vmatprep.subr.bf16.mxu0 0
  %633 = vmatpush1.bf16.msra.mxu0 0
  %634 = vmatprep.subr.bf16.mxu0 0
  %635 = vmatpush1.bf16.msra.mxu0 0
  %636 = vmatprep.subr.bf16.mxu0 0
  %637 = vmatpush1.bf16.msra.mxu0 0
  %638 = vmatprep.subr.bf16.mxu0 0
  %639 = vmatpush1.bf16.msra.mxu0 0
  %640 = vmatprep.subr.bf16.mxu0 0
  %641 = vmatpush1.bf16.msra.mxu0 0
  %642 = vmatprep.subr.bf16.mxu0 0
  %643 = vmatpush1.bf16.msra.mxu0 0
  %644 = vmatprep.subr.bf16.mxu0 0
  %645 = vmatpush1.bf16.msra.mxu0 0
  %646 = vmatprep.subr.bf16.mxu0 0
  %647 = vmatpush1.bf16.msra.mxu0 0
  %648 = vmatprep.subr.bf16.mxu0 0
  %649 = vmatpush1.bf16.msra.mxu0 0
  %650 = vmatprep.subr.bf16.mxu0 0
  %651 = vmatpush1.bf16.msra.mxu0 0
  %652 = vmatprep.subr.bf16.mxu0 0
  %653 = vmatpush1.bf16.msra.mxu0 0
  %654 = vmatprep.mubr.bf16.mxu0 0
  %655 = vmatmul.mubr.bf16.gmra.mrb[0].mxu0 %v620
  %v656 = vpop.f32.mrb[0].mxu0
  %v657 = vadd.f32 0.0, %v656
  %v658 = vpop.f32.mrb[0].mxu0
  %v659 = vpop.f32.mrb[0].mxu0
  %v660 = vpop.f32.mrb[0].mxu0
  %661 = vdwg.mxu0
  %v662 = vadd.f32 %v614, %v657
  %v663 = vxor.u32 %v613, 2147483648
  %v664 = vxor.u32 %v662, 2147483648
  %v665 = vmul.f32 %v663, 1.442695
  %v666 = vpow.pop %v665
  %v667 = vmul.f32 %v664, 1.442695
  %v668 = vpow.pop %v667
  %v669 = vadd.f32 %v666, 1.0
  %v670 = vadd.f32 %v668, 1.0
  %v671 = vrcp.pop %v669
  %v672 = vmul.f32 1.0, %v671
  %v673 = vrcp.pop %v670
  %v674 = vmul.f32 1.0, %v673
  %v675 = vtanh.pop %v613
  %v676 = vtanh.pop %v662
  %v677 = vmul.f32 %v672, %v533
  %v678 = vmul.f32 %v674, %v534
  %681 = vrot.lane.b32.xlu0 %v675, 32
  %v682 = vpop.permute.xlu0 %681
  %683 = vrot.lane.b32.xlu0 %v676, 32
  %v684 = vpop.permute.xlu0 %683
  %v687 = vmul.f32 %v672, %v682
  %v688 = vmul.f32 %v674, %v684
  %691 = vrot.lane.b32.xlu0 %v687, 32
  %v692 = vpop.permute.xlu0 %691
  %693 = vrot.lane.b32.xlu0 %v688, 32
  %v694 = vpop.permute.xlu0 %693
  %v697 = vadd.f32 %v677, %v692
  %v698 = vadd.f32 %v678, %v694
  %v699 = vtanh.pop %v697
  %v700 = vtanh.pop %v698
  %703 = vrot.lane.b32.xlu0 %v699, 32
  %v704 = vpop.permute.xlu0 %703
  %705 = vrot.lane.b32.xlu0 %v700, 32
  %v706 = vpop.permute.xlu0 %705
  %v709 = vmul.f32 %v672, %v704
  %v710 = vmul.f32 %v674, %v706
  %v711 = vtanh.pop %v709
  %v712 = vtanh.pop %v710
  %v713 = vmul.f32 %v711, %v380
  %v714 = vmul.f32 %v712, %v382
  %717 = vrot.lane.b32.xlu0 %v713, 64
  %v718 = vpop.permute.xlu0 %717
  %719 = vrot.lane.b32.xlu0 %v714, 64
  %v720 = vpop.permute.xlu0 %719
  %v723 = vsel %vm100, %v718, 0.0
  %724 = vadd.xlane.f32.xlu0 %v723
  %v725 = vpop.xlane.xlu0 %724
  %v726 = vsel %vm100, %v720, 0.0
  %727 = vadd.xlane.f32.xlu0 %v726
  %v728 = vpop.xlane.xlu0 %727
  %v729 = vld [vmem:[#allocation2 + $0x30] sm:$0xff]
  %v730 = vpack.c.bf16 %v709, %v709
  %732 = vrot.lane.b32.xlu0 %v730, 64
  %v733 = vpop.permute.xlu0 %732
  %v735 = vsel %vm100, %v733, 0
  %737 = vmatprep.subr.bf16.mxu0 0
  %738 = vmatpush1.bf16.msra.mxu0 %v227
  %739 = vmatprep.subr.bf16.mxu0 0
  %740 = vmatpush1.bf16.msra.mxu0 %v228
  %741 = vmatprep.subr.bf16.mxu0 0
  %742 = vmatpush1.bf16.msra.mxu0 0
  %743 = vmatprep.subr.bf16.mxu0 0
  %744 = vmatpush1.bf16.msra.mxu0 0
  %745 = vmatprep.subr.bf16.mxu0 0
  %746 = vmatpush1.bf16.msra.mxu0 0
  %747 = vmatprep.subr.bf16.mxu0 0
  %748 = vmatpush1.bf16.msra.mxu0 0
  %749 = vmatprep.subr.bf16.mxu0 0
  %750 = vmatpush1.bf16.msra.mxu0 0
  %751 = vmatprep.subr.bf16.mxu0 0
  %752 = vmatpush1.bf16.msra.mxu0 0
  %753 = vmatprep.subr.bf16.mxu0 0
  %754 = vmatpush1.bf16.msra.mxu0 0
  %755 = vmatprep.subr.bf16.mxu0 0
  %756 = vmatpush1.bf16.msra.mxu0 0
  %757 = vmatprep.subr.bf16.mxu0 0
  %758 = vmatpush1.bf16.msra.mxu0 0
  %759 = vmatprep.subr.bf16.mxu0 0
  %760 = vmatpush1.bf16.msra.mxu0 0
  %761 = vmatprep.subr.bf16.mxu0 0
  %762 = vmatpush1.bf16.msra.mxu0 0
  %763 = vmatprep.subr.bf16.mxu0 0
  %764 = vmatpush1.bf16.msra.mxu0 0
  %765 = vmatprep.subr.bf16.mxu0 0
  %766 = vmatpush1.bf16.msra.mxu0 0
  %767 = vmatprep.subr.bf16.mxu0 0
  %768 = vmatpush1.bf16.msra.mxu0 0
  %769 = vmatprep.mubr.bf16.mxu0 0
  %770 = vmatmul.mubr.bf16.gmra.mrb[0].mxu0 %v735
  %v771 = vpop.f32.mrb[0].mxu0
  %v772 = vadd.f32 0.0, %v771
  %v773 = vpop.f32.mrb[0].mxu0
  %v774 = vpop.f32.mrb[0].mxu0
  %v775 = vpop.f32.mrb[0].mxu0
  %776 = vdwg.mxu0
  %v777 = vadd.f32 %v729, %v772
  %v778 = vld [vmem:[#allocation2 + $0x48] sm:$0xff]
  %v779 = vpack.c.bf16 %v710, %v710
  %781 = vrot.lane.b32.xlu0 %v779, 64
  %v782 = vpop.permute.xlu0 %781
  %v784 = vsel %vm100, %v782, 0
  %786 = vmatprep.subr.bf16.mxu0 0
  %787 = vmatpush1.bf16.msra.mxu0 %v284
  %788 = vmatprep.subr.bf16.mxu0 0
  %789 = vmatpush1.bf16.msra.mxu0 %v285
  %790 = vmatprep.subr.bf16.mxu0 0
  %791 = vmatpush1.bf16.msra.mxu0 0
  %792 = vmatprep.subr.bf16.mxu0 0
  %793 = vmatpush1.bf16.msra.mxu0 0
  %794 = vmatprep.subr.bf16.mxu0 0
  %795 = vmatpush1.bf16.msra.mxu0 0
  %796 = vmatprep.subr.bf16.mxu0 0
  %797 = vmatpush1.bf16.msra.mxu0 0
  %798 = vmatprep.subr.bf16.mxu0 0
  %799 = vmatpush1.bf16.msra.mxu0 0
  %800 = vmatprep.subr.bf16.mxu0 0
  %801 = vmatpush1.bf16.msra.mxu0 0
  %802 = vmatprep.subr.bf16.mxu0 0
  %803 = vmatpush1.bf16.msra.mxu0 0
  %804 = vmatprep.subr.bf16.mxu0 0
  %805 = vmatpush1.bf16.msra.mxu0 0
  %806 = vmatprep.subr.bf16.mxu0 0
  %807 = vmatpush1.bf16.msra.mxu0 0
  %808 = vmatprep.subr.bf16.mxu0 0
  %809 = vmatpush1.bf16.msra.mxu0 0
  %810 = vmatprep.subr.bf16.mxu0 0
  %811 = vmatpush1.bf16.msra.mxu0 0
  %812 = vmatprep.subr.bf16.mxu0 0
  %813 = vmatpush1.bf16.msra.mxu0 0
  %814 = vmatprep.subr.bf16.mxu0 0
  %815 = vmatpush1.bf16.msra.mxu0 0
  %816 = vmatprep.subr.bf16.mxu0 0
  %817 = vmatpush1.bf16.msra.mxu0 0
  %818 = vmatprep.mubr.bf16.mxu0 0
  %819 = vmatmul.mubr.bf16.gmra.mrb[0].mxu0 %v784
  %v820 = vpop.f32.mrb[0].mxu0
  %v821 = vadd.f32 0.0, %v820
  %v822 = vpop.f32.mrb[0].mxu0
  %v823 = vpop.f32.mrb[0].mxu0
  %v824 = vpop.f32.mrb[0].mxu0
  %825 = vdwg.mxu0
  %v826 = vadd.f32 %v778, %v821
  %v827 = vxor.u32 %v777, 2147483648
  %v828 = vxor.u32 %v826, 2147483648
  %v829 = vmul.f32 %v827, 1.442695
  %v830 = vpow.pop %v829
  %v831 = vmul.f32 %v828, 1.442695
  %v832 = vpow.pop %v831
  %v833 = vadd.f32 %v830, 1.0
  %v834 = vadd.f32 %v832, 1.0
  %v835 = vrcp.pop %v833
  %v836 = vmul.f32 1.0, %v835
  %v837 = vrcp.pop %v834
  %v838 = vmul.f32 1.0, %v837
  %v839 = vtanh.pop %v777
  %v840 = vtanh.pop %v826
  %v841 = vmul.f32 %v836, %v697
  %v842 = vmul.f32 %v838, %v698
  %845 = vrot.lane.b32.xlu0 %v839, 32
  %v846 = vpop.permute.xlu0 %845
  %847 = vrot.lane.b32.xlu0 %v840, 32
  %v848 = vpop.permute.xlu0 %847
  %v851 = vmul.f32 %v836, %v846
  %v852 = vmul.f32 %v838, %v848
  %855 = vrot.lane.b32.xlu0 %v851, 32
  %v856 = vpop.permute.xlu0 %855
  %857 = vrot.lane.b32.xlu0 %v852, 32
  %v858 = vpop.permute.xlu0 %857
  %v861 = vadd.f32 %v841, %v856
  %v862 = vadd.f32 %v842, %v858
  %v863 = vtanh.pop %v861
  %v864 = vtanh.pop %v862
  %867 = vrot.lane.b32.xlu0 %v863, 32
  %v868 = vpop.permute.xlu0 %867
  %869 = vrot.lane.b32.xlu0 %v864, 32
  %v870 = vpop.permute.xlu0 %869
  %v873 = vmul.f32 %v836, %v868
  %v874 = vmul.f32 %v838, %v870
  %v875 = vtanh.pop %v873
  %v876 = vtanh.pop %v874
  %v877 = vmul.f32 %v875, %v380
  %v878 = vmul.f32 %v876, %v382
  %881 = vrot.lane.b32.xlu0 %v877, 64
  %v882 = vpop.permute.xlu0 %881
  %883 = vrot.lane.b32.xlu0 %v878, 64
  %v884 = vpop.permute.xlu0 %883
  %v887 = vsel %vm100, %v882, 0.0
  %888 = vadd.xlane.f32.xlu0 %v887
  %v889 = vpop.xlane.xlu0 %888
  %v890 = vsel %vm100, %v884, 0.0
  %891 = vadd.xlane.f32.xlu0 %v890
  %v892 = vpop.xlane.xlu0 %891
  %v893 = vld [vmem:[#allocation2 + $0x40] sm:$0xff]
  %v894 = vpack.c.bf16 %v873, %v873
  %896 = vrot.lane.b32.xlu0 %v894, 64
  %v897 = vpop.permute.xlu0 %896
  %v899 = vsel %vm100, %v897, 0
  %901 = vmatprep.subr.bf16.mxu0 0
  %902 = vmatpush1.bf16.msra.mxu0 %v227
  %903 = vmatprep.subr.bf16.mxu0 0
  %904 = vmatpush1.bf16.msra.mxu0 %v228
  %905 = vmatprep.subr.bf16.mxu0 0
  %906 = vmatpush1.bf16.msra.mxu0 0
  %907 = vmatprep.subr.bf16.mxu0 0
  %908 = vmatpush1.bf16.msra.mxu0 0
  %909 = vmatprep.subr.bf16.mxu0 0
  %910 = vmatpush1.bf16.msra.mxu0 0
  %911 = vmatprep.subr.bf16.mxu0 0
  %912 = vmatpush1.bf16.msra.mxu0 0
  %913 = vmatprep.subr.bf16.mxu0 0
  %914 = vmatpush1.bf16.msra.mxu0 0
  %915 = vmatprep.subr.bf16.mxu0 0
  %916 = vmatpush1.bf16.msra.mxu0 0
  %917 = vmatprep.subr.bf16.mxu0 0
  %918 = vmatpush1.bf16.msra.mxu0 0
  %919 = vmatprep.subr.bf16.mxu0 0
  %920 = vmatpush1.bf16.msra.mxu0 0
  %921 = vmatprep.subr.bf16.mxu0 0
  %922 = vmatpush1.bf16.msra.mxu0 0
  %923 = vmatprep.subr.bf16.mxu0 0
  %924 = vmatpush1.bf16.msra.mxu0 0
  %925 = vmatprep.subr.bf16.mxu0 0
  %926 = vmatpush1.bf16.msra.mxu0 0
  %927 = vmatprep.subr.bf16.mxu0 0
  %928 = vmatpush1.bf16.msra.mxu0 0
  %929 = vmatprep.subr.bf16.mxu0 0
  %930 = vmatpush1.bf16.msra.mxu0 0
  %931 = vmatprep.subr.bf16.mxu0 0
  %932 = vmatpush1.bf16.msra.mxu0 0
  %933 = vmatprep.mubr.bf16.mxu0 0
  %934 = vmatmul.mubr.bf16.gmra.mrb[0].mxu0 %v899
  %v935 = vpop.f32.mrb[0].mxu0
  %v936 = vadd.f32 0.0, %v935
  %v937 = vpop.f32.mrb[0].mxu0
  %v938 = vpop.f32.mrb[0].mxu0
  %v939 = vpop.f32.mrb[0].mxu0
  %940 = vdwg.mxu0
  %v941 = vadd.f32 %v893, %v936
  %v942 = vld [vmem:[#allocation2 + $0x38] sm:$0xff]
  %v943 = vpack.c.bf16 %v874, %v874
  %945 = vrot.lane.b32.xlu0 %v943, 64
  %v946 = vpop.permute.xlu0 %945
  %v948 = vsel %vm100, %v946, 0
  %950 = vmatprep.subr.bf16.mxu0 0
  %951 = vmatpush1.bf16.msra.mxu0 %v284
  %952 = vmatprep.subr.bf16.mxu0 0
  %953 = vmatpush1.bf16.msra.mxu0 %v285
  %954 = vmatprep.subr.bf16.mxu0 0
  %955 = vmatpush1.bf16.msra.mxu0 0
  %956 = vmatprep.subr.bf16.mxu0 0
  %957 = vmatpush1.bf16.msra.mxu0 0
  %958 = vmatprep.subr.bf16.mxu0 0
  %959 = vmatpush1.bf16.msra.mxu0 0
  %960 = vmatprep.subr.bf16.mxu0 0
  %961 = vmatpush1.bf16.msra.mxu0 0
  %962 = vmatprep.subr.bf16.mxu0 0
  %963 = vmatpush1.bf16.msra.mxu0 0
  %964 = vmatprep.subr.bf16.mxu0 0
  %965 = vmatpush1.bf16.msra.mxu0 0
  %966 = vmatprep.subr.bf16.mxu0 0
  %967 = vmatpush1.bf16.msra.mxu0 0
  %968 = vmatprep.subr.bf16.mxu0 0
  %969 = vmatpush1.bf16.msra.mxu0 0
  %970 = vmatprep.subr.bf16.mxu0 0
  %971 = vmatpush1.bf16.msra.mxu0 0
  %972 = vmatprep.subr.bf16.mxu0 0
  %973 = vmatpush1.bf16.msra.mxu0 0
  %974 = vmatprep.subr.bf16.mxu0 0
  %975 = vmatpush1.bf16.msra.mxu0 0
  %976 = vmatprep.subr.bf16.mxu0 0
  %977 = vmatpush1.bf16.msra.mxu0 0
  %978 = vmatprep.subr.bf16.mxu0 0
  %979 = vmatpush1.bf16.msra.mxu0 0
  %980 = vmatprep.subr.bf16.mxu0 0
  %981 = vmatpush1.bf16.msra.mxu0 0
  %982 = vmatprep.mubr.bf16.mxu0 0
  %983 = vmatmul.mubr.bf16.gmra.mrb[0].mxu0 %v948
  %v984 = vpop.f32.mrb[0].mxu0
  %v985 = vadd.f32 0.0, %v984
  %v986 = vpop.f32.mrb[0].mxu0
  %v987 = vpop.f32.mrb[0].mxu0
  %v988 = vpop.f32.mrb[0].mxu0
  %989 = vdwg.mxu0
  %v990 = vadd.f32 %v942, %v985
  %v991 = vxor.u32 %v941, 2147483648
  %v992 = vxor.u32 %v990, 2147483648
  %v993 = vmul.f32 %v991, 1.442695
  %v994 = vpow.pop %v993
  %v995 = vmul.f32 %v992, 1.442695
  %v996 = vpow.pop %v995
  %v997 = vadd.f32 %v994, 1.0
  %v998 = vadd.f32 %v996, 1.0
  %v999 = vrcp.pop %v997
  %v1000 = vmul.f32 1.0, %v999
  %v1001 = vrcp.pop %v998
  %v1002 = vmul.f32 1.0, %v1001
  %v1003 = vtanh.pop %v941
  %v1004 = vtanh.pop %v990
  %v1005 = vmul.f32 %v1000, %v861
  %v1006 = vmul.f32 %v1002, %v862
  %1009 = vrot.lane.b32.xlu0 %v1003, 32
  %v1010 = vpop.permute.xlu0 %1009
  %1011 = vrot.lane.b32.xlu0 %v1004, 32
  %v1012 = vpop.permute.xlu0 %1011
  %v1015 = vmul.f32 %v1000, %v1010
  %v1016 = vmul.f32 %v1002, %v1012
  %1019 = vrot.lane.b32.xlu0 %v1015, 32
  %v1020 = vpop.permute.xlu0 %1019
  %1021 = vrot.lane.b32.xlu0 %v1016, 32
  %v1022 = vpop.permute.xlu0 %1021
  %v1025 = vadd.f32 %v1005, %v1020
  %v1026 = vadd.f32 %v1006, %v1022
  %v1027 = vtanh.pop %v1025
  %v1028 = vtanh.pop %v1026
  %1031 = vrot.lane.b32.xlu0 %v1027, 32
  %v1032 = vpop.permute.xlu0 %1031
  %1033 = vrot.lane.b32.xlu0 %v1028, 32
  %v1034 = vpop.permute.xlu0 %1033
  %v1037 = vmul.f32 %v1000, %v1032
  %v1038 = vmul.f32 %v1002, %v1034
  %v1039 = vtanh.pop %v1037
  %v1040 = vtanh.pop %v1038
  %v1041 = vmul.f32 %v1039, %v380
  %v1042 = vmul.f32 %v1040, %v382
  %1045 = vrot.lane.b32.xlu0 %v1041, 64
  %v1046 = vpop.permute.xlu0 %1045
  %1047 = vrot.lane.b32.xlu0 %v1042, 64
  %v1048 = vpop.permute.xlu0 %1047
  %v1051 = vsel %vm100, %v1046, 0.0
  %1052 = vadd.xlane.f32.xlu0 %v1051
  %v1053 = vpop.xlane.xlu0 %1052
  %v1054 = vsel %vm100, %v1048, 0.0
  %1055 = vadd.xlane.f32.xlu0 %v1054
  %v1056 = vpop.xlane.xlu0 %1055
  %v1057 = vld [vmem:[#allocation2 + $0x50] sm:$0xff]
  %v1058 = vpack.c.bf16 %v1037, %v1037
  %1060 = vrot.lane.b32.xlu0 %v1058, 64
  %v1061 = vpop.permute.xlu0 %1060
  %v1063 = vsel %vm100, %v1061, 0
  %1065 = vmatprep.subr.bf16.mxu0 0
  %1066 = vmatpush1.bf16.msra.mxu0 %v227
  %1067 = vmatprep.subr.bf16.mxu0 0
  %1068 = vmatpush1.bf16.msra.mxu0 %v228
  %1069 = vmatprep.subr.bf16.mxu0 0
  %1070 = vmatpush1.bf16.msra.mxu0 0
  %1071 = vmatprep.subr.bf16.mxu0 0
  %1072 = vmatpush1.bf16.msra.mxu0 0
  %1073 = vmatprep.subr.bf16.mxu0 0
  %1074 = vmatpush1.bf16.msra.mxu0 0
  %1075 = vmatprep.subr.bf16.mxu0 0
  %1076 = vmatpush1.bf16.msra.mxu0 0
  %1077 = vmatprep.subr.bf16.mxu0 0
  %1078 = vmatpush1.bf16.msra.mxu0 0
  %1079 = vmatprep.subr.bf16.mxu0 0
  %1080 = vmatpush1.bf16.msra.mxu0 0
  %1081 = vmatprep.subr.bf16.mxu0 0
  %1082 = vmatpush1.bf16.msra.mxu0 0
  %1083 = vmatprep.subr.bf16.mxu0 0
  %1084 = vmatpush1.bf16.msra.mxu0 0
  %1085 = vmatprep.subr.bf16.mxu0 0
  %1086 = vmatpush1.bf16.msra.mxu0 0
  %1087 = vmatprep.subr.bf16.mxu0 0
  %1088 = vmatpush1.bf16.msra.mxu0 0
  %1089 = vmatprep.subr.bf16.mxu0 0
  %1090 = vmatpush1.bf16.msra.mxu0 0
  %1091 = vmatprep.subr.bf16.mxu0 0
  %1092 = vmatpush1.bf16.msra.mxu0 0
  %1093 = vmatprep.subr.bf16.mxu0 0
  %1094 = vmatpush1.bf16.msra.mxu0 0
  %1095 = vmatprep.subr.bf16.mxu0 0
  %1096 = vmatpush1.bf16.msra.mxu0 0
  %1097 = vmatprep.mubr.bf16.mxu0 0
  %1098 = vmatmul.mubr.bf16.gmra.mrb[0].mxu0 %v1063
  %v1099 = vpop.f32.mrb[0].mxu0
  %v1100 = vadd.f32 0.0, %v1099
  %v1101 = vpop.f32.mrb[0].mxu0
  %v1102 = vpop.f32.mrb[0].mxu0
  %v1103 = vpop.f32.mrb[0].mxu0
  %1104 = vdwg.mxu0
  %v1105 = vadd.f32 %v1057, %v1100
  %v1106 = vld [vmem:[#allocation2 + $0x28] sm:$0xff]
  %v1107 = vpack.c.bf16 %v1038, %v1038
  %1109 = vrot.lane.b32.xlu0 %v1107, 64
  %v1110 = vpop.permute.xlu0 %1109
  %v1112 = vsel %vm100, %v1110, 0
  %1114 = vmatprep.subr.bf16.mxu0 0
  %1115 = vmatpush1.bf16.msra.mxu0 %v284
  %1116 = vmatprep.subr.bf16.mxu0 0
  %1117 = vmatpush1.bf16.msra.mxu0 %v285
  %1118 = vmatprep.subr.bf16.mxu0 0
  %1119 = vmatpush1.bf16.msra.mxu0 0
  %1120 = vmatprep.subr.bf16.mxu0 0
  %1121 = vmatpush1.bf16.msra.mxu0 0
  %1122 = vmatprep.subr.bf16.mxu0 0
  %1123 = vmatpush1.bf16.msra.mxu0 0
  %1124 = vmatprep.subr.bf16.mxu0 0
  %1125 = vmatpush1.bf16.msra.mxu0 0
  %1126 = vmatprep.subr.bf16.mxu0 0
  %1127 = vmatpush1.bf16.msra.mxu0 0
  %1128 = vmatprep.subr.bf16.mxu0 0
  %1129 = vmatpush1.bf16.msra.mxu0 0
  %1130 = vmatprep.subr.bf16.mxu0 0
  %1131 = vmatpush1.bf16.msra.mxu0 0
  %1132 = vmatprep.subr.bf16.mxu0 0
  %1133 = vmatpush1.bf16.msra.mxu0 0
  %1134 = vmatprep.subr.bf16.mxu0 0
  %1135 = vmatpush1.bf16.msra.mxu0 0
  %1136 = vmatprep.subr.bf16.mxu0 0
  %1137 = vmatpush1.bf16.msra.mxu0 0
  %1138 = vmatprep.subr.bf16.mxu0 0
  %1139 = vmatpush1.bf16.msra.mxu0 0
  %1140 = vmatprep.subr.bf16.mxu0 0
  %1141 = vmatpush1.bf16.msra.mxu0 0
  %1142 = vmatprep.subr.bf16.mxu0 0
  %1143 = vmatpush1.bf16.msra.mxu0 0
  %1144 = vmatprep.subr.bf16.mxu0 0
  %1145 = vmatpush1.bf16.msra.mxu0 0
  %1146 = vmatprep.mubr.bf16.mxu0 0
  %1147 = vmatmul.mubr.bf16.gmra.mrb[0].mxu0 %v1112
  %v1148 = vpop.f32.mrb[0].mxu0
  %v1149 = vadd.f32 0.0, %v1148
  %v1150 = vpop.f32.mrb[0].mxu0
  %v1151 = vpop.f32.mrb[0].mxu0
  %v1152 = vpop.f32.mrb[0].mxu0
  %1153 = vdwg.mxu0
  %v1154 = vadd.f32 %v1106, %v1149
  %v1155 = vxor.u32 %v1105, 2147483648
  %v1156 = vxor.u32 %v1154, 2147483648
  %v1157 = vmul.f32 %v1155, 1.442695
  %v1158 = vpow.pop %v1157
  %v1159 = vmul.f32 %v1156, 1.442695
  %v1160 = vpow.pop %v1159
  %v1161 = vadd.f32 %v1158, 1.0
  %v1162 = vadd.f32 %v1160, 1.0
  %v1163 = vrcp.pop %v1161
  %v1164 = vmul.f32 1.0, %v1163
  %v1165 = vrcp.pop %v1162
  %v1166 = vmul.f32 1.0, %v1165
  %v1167 = vtanh.pop %v1105
  %v1168 = vtanh.pop %v1154
  %v1169 = vmul.f32 %v1164, %v1025
  %v1170 = vmul.f32 %v1166, %v1026
  %1173 = vrot.lane.b32.xlu0 %v1167, 32
  %v1174 = vpop.permute.xlu0 %1173
  %1175 = vrot.lane.b32.xlu0 %v1168, 32
  %v1176 = vpop.permute.xlu0 %1175
  %v1179 = vmul.f32 %v1164, %v1174
  %v1180 = vmul.f32 %v1166, %v1176
  %1183 = vrot.lane.b32.xlu0 %v1179, 32
  %v1184 = vpop.permute.xlu0 %1183
  %1185 = vrot.lane.b32.xlu0 %v1180, 32
  %v1186 = vpop.permute.xlu0 %1185
  %v1189 = vadd.f32 %v1169, %v1184
  %v1190 = vadd.f32 %v1170, %v1186
  %v1191 = vtanh.pop %v1189
  %v1192 = vtanh.pop %v1190
  %1195 = vrot.lane.b32.xlu0 %v1191, 32
  %v1196 = vpop.permute.xlu0 %1195
  %1197 = vrot.lane.b32.xlu0 %v1192, 32
  %v1198 = vpop.permute.xlu0 %1197
  %v1201 = vmul.f32 %v1164, %v1196
  %v1202 = vmul.f32 %v1166, %v1198
  %v1203 = vtanh.pop %v1201
  %v1204 = vtanh.pop %v1202
  %v1205 = vmul.f32 %v1203, %v380
  %v1206 = vmul.f32 %v1204, %v382
  %1209 = vrot.lane.b32.xlu0 %v1205, 64
  %v1210 = vpop.permute.xlu0 %1209
  %1211 = vrot.lane.b32.xlu0 %v1206, 64
  %v1212 = vpop.permute.xlu0 %1211
  %v1215 = vsel %vm100, %v1210, 0.0
  %1216 = vadd.xlane.f32.xlu0 %v1215
  %v1217 = vpop.xlane.xlu0 %1216
  %v1218 = vsel %vm100, %v1212, 0.0
  %1219 = vadd.xlane.f32.xlu0 %v1218
  %v1220 = vpop.xlane.xlu0 %1219
  %v1221 = vld [vmem:[#allocation2 + $0x60] sm:$0xff]
  %v1222 = vpack.c.bf16 %v1201, %v1201
  %1224 = vrot.lane.b32.xlu0 %v1222, 64
  %v1225 = vpop.permute.xlu0 %1224
  %v1227 = vsel %vm100, %v1225, 0
  %1229 = vmatprep.subr.bf16.mxu0 0
  %1230 = vmatpush1.bf16.msra.mxu0 %v227
  %1231 = vmatprep.subr.bf16.mxu0 0
  %1232 = vmatpush1.bf16.msra.mxu0 %v228
  %1233 = vmatprep.subr.bf16.mxu0 0
  %1234 = vmatpush1.bf16.msra.mxu0 0
  %1235 = vmatprep.subr.bf16.mxu0 0
  %1236 = vmatpush1.bf16.msra.mxu0 0
  %1237 = vmatprep.subr.bf16.mxu0 0
  %1238 = vmatpush1.bf16.msra.mxu0 0
  %1239 = vmatprep.subr.bf16.mxu0 0
  %1240 = vmatpush1.bf16.msra.mxu0 0
  %1241 = vmatprep.subr.bf16.mxu0 0
  %1242 = vmatpush1.bf16.msra.mxu0 0
  %1243 = vmatprep.subr.bf16.mxu0 0
  %1244 = vmatpush1.bf16.msra.mxu0 0
  %1245 = vmatprep.subr.bf16.mxu0 0
  %1246 = vmatpush1.bf16.msra.mxu0 0
  %1247 = vmatprep.subr.bf16.mxu0 0
  %1248 = vmatpush1.bf16.msra.mxu0 0
  %1249 = vmatprep.subr.bf16.mxu0 0
  %1250 = vmatpush1.bf16.msra.mxu0 0
  %1251 = vmatprep.subr.bf16.mxu0 0
  %1252 = vmatpush1.bf16.msra.mxu0 0
  %1253 = vmatprep.subr.bf16.mxu0 0
  %1254 = vmatpush1.bf16.msra.mxu0 0
  %1255 = vmatprep.subr.bf16.mxu0 0
  %1256 = vmatpush1.bf16.msra.mxu0 0
  %1257 = vmatprep.subr.bf16.mxu0 0
  %1258 = vmatpush1.bf16.msra.mxu0 0
  %1259 = vmatprep.subr.bf16.mxu0 0
  %1260 = vmatpush1.bf16.msra.mxu0 0
  %1261 = vmatprep.mubr.bf16.mxu0 0
  %1262 = vmatmul.mubr.bf16.gmra.mrb[0].mxu0 %v1227
  %v1263 = vpop.f32.mrb[0].mxu0
  %v1264 = vadd.f32 0.0, %v1263
  %v1265 = vpop.f32.mrb[0].mxu0
  %v1266 = vpop.f32.mrb[0].mxu0
  %v1267 = vpop.f32.mrb[0].mxu0
  %1268 = vdwg.mxu0
  %v1269 = vadd.f32 %v1221, %v1264
  %v1270 = vld [vmem:[#allocation2 + $0x18] sm:$0xff]
  %v1271 = vpack.c.bf16 %v1202, %v1202
  %1273 = vrot.lane.b32.xlu0 %v1271, 64
  %v1274 = vpop.permute.xlu0 %1273
  %v1276 = vsel %vm100, %v1274, 0
  %1278 = vmatprep.subr.bf16.mxu0 0
  %1279 = vmatpush1.bf16.msra.mxu0 %v284
  %1280 = vmatprep.subr.bf16.mxu0 0
  %1281 = vmatpush1.bf16.msra.mxu0 %v285
  %1282 = vmatprep.subr.bf16.mxu0 0
  %1283 = vmatpush1.bf16.msra.mxu0 0
  %1284 = vmatprep.subr.bf16.mxu0 0
  %1285 = vmatpush1.bf16.msra.mxu0 0
  %1286 = vmatprep.subr.bf16.mxu0 0
  %1287 = vmatpush1.bf16.msra.mxu0 0
  %1288 = vmatprep.subr.bf16.mxu0 0
  %1289 = vmatpush1.bf16.msra.mxu0 0
  %1290 = vmatprep.subr.bf16.mxu0 0
  %1291 = vmatpush1.bf16.msra.mxu0 0
  %1292 = vmatprep.subr.bf16.mxu0 0
  %1293 = vmatpush1.bf16.msra.mxu0 0
  %1294 = vmatprep.subr.bf16.mxu0 0
  %1295 = vmatpush1.bf16.msra.mxu0 0
  %1296 = vmatprep.subr.bf16.mxu0 0
  %1297 = vmatpush1.bf16.msra.mxu0 0
  %1298 = vmatprep.subr.bf16.mxu0 0
  %1299 = vmatpush1.bf16.msra.mxu0 0
  %1300 = vmatprep.subr.bf16.mxu0 0
  %1301 = vmatpush1.bf16.msra.mxu0 0
  %1302 = vmatprep.subr.bf16.mxu0 0
  %1303 = vmatpush1.bf16.msra.mxu0 0
  %1304 = vmatprep.subr.bf16.mxu0 0
  %1305 = vmatpush1.bf16.msra.mxu0 0
  %1306 = vmatprep.subr.bf16.mxu0 0
  %1307 = vmatpush1.bf16.msra.mxu0 0
  %1308 = vmatprep.subr.bf16.mxu0 0
  %1309 = vmatpush1.bf16.msra.mxu0 0
  %1310 = vmatprep.mubr.bf16.mxu0 0
  %1311 = vmatmul.mubr.bf16.gmra.mrb[0].mxu0 %v1276
  %v1312 = vpop.f32.mrb[0].mxu0
  %v1313 = vadd.f32 0.0, %v1312
  %v1314 = vpop.f32.mrb[0].mxu0
  %v1315 = vpop.f32.mrb[0].mxu0
  %v1316 = vpop.f32.mrb[0].mxu0
  %1317 = vdwg.mxu0
  %v1318 = vadd.f32 %v1270, %v1313
  %v1319 = vxor.u32 %v1269, 2147483648
  %v1320 = vxor.u32 %v1318, 2147483648
  %v1321 = vmul.f32 %v1319, 1.442695
  %v1322 = vpow.pop %v1321
  %v1323 = vmul.f32 %v1320, 1.442695
  %v1324 = vpow.pop %v1323
  %v1325 = vadd.f32 %v1322, 1.0
  %v1326 = vadd.f32 %v1324, 1.0
  %v1327 = vrcp.pop %v1325
  %v1328 = vmul.f32 1.0, %v1327
  %v1329 = vrcp.pop %v1326
  %v1330 = vmul.f32 1.0, %v1329
  %v1331 = vtanh.pop %v1269
  %v1332 = vtanh.pop %v1318
  %v1333 = vmul.f32 %v1328, %v1189
  %v1334 = vmul.f32 %v1330, %v1190
  %1337 = vrot.lane.b32.xlu0 %v1331, 32
  %v1338 = vpop.permute.xlu0 %1337
  %1339 = vrot.lane.b32.xlu0 %v1332, 32
  %v1340 = vpop.permute.xlu0 %1339
  %v1343 = vmul.f32 %v1328, %v1338
  %v1344 = vmul.f32 %v1330, %v1340
  %1347 = vrot.lane.b32.xlu0 %v1343, 32
  %v1348 = vpop.permute.xlu0 %1347
  %1349 = vrot.lane.b32.xlu0 %v1344, 32
  %v1350 = vpop.permute.xlu0 %1349
  %v1353 = vadd.f32 %v1333, %v1348
  %v1354 = vadd.f32 %v1334, %v1350
  %v1355 = vtanh.pop %v1353
  %v1356 = vtanh.pop %v1354
  %1359 = vrot.lane.b32.xlu0 %v1355, 32
  %v1360 = vpop.permute.xlu0 %1359
  %1361 = vrot.lane.b32.xlu0 %v1356, 32
  %v1362 = vpop.permute.xlu0 %1361
  %v1365 = vmul.f32 %v1328, %v1360
  %v1366 = vmul.f32 %v1330, %v1362
  %v1367 = vtanh.pop %v1365
  %v1368 = vtanh.pop %v1366
  %v1369 = vmul.f32 %v1367, %v380
  %v1370 = vmul.f32 %v1368, %v382
  %1373 = vrot.lane.b32.xlu0 %v1369, 64
  %v1374 = vpop.permute.xlu0 %1373
  %1375 = vrot.lane.b32.xlu0 %v1370, 64
  %v1376 = vpop.permute.xlu0 %1375
  %v1379 = vsel %vm100, %v1374, 0.0
  %1380 = vadd.xlane.f32.xlu0 %v1379
  %v1381 = vpop.xlane.xlu0 %1380
  %v1382 = vsel %vm100, %v1376, 0.0
  %1383 = vadd.xlane.f32.xlu0 %v1382
  %v1384 = vpop.xlane.xlu0 %1383
  %v1385 = vld [vmem:[#allocation2 + $0x70] sm:$0xff]
  %v1386 = vpack.c.bf16 %v1365, %v1365
  %1388 = vrot.lane.b32.xlu0 %v1386, 64
  %v1389 = vpop.permute.xlu0 %1388
  %v1391 = vsel %vm100, %v1389, 0
  %1393 = vmatprep.subr.bf16.mxu0 0
  %1394 = vmatpush1.bf16.msra.mxu0 %v227
  %1395 = vmatprep.subr.bf16.mxu0 0
  %1396 = vmatpush1.bf16.msra.mxu0 %v228
  %1397 = vmatprep.subr.bf16.mxu0 0
  %1398 = vmatpush1.bf16.msra.mxu0 0
  %1399 = vmatprep.subr.bf16.mxu0 0
  %1400 = vmatpush1.bf16.msra.mxu0 0
  %1401 = vmatprep.subr.bf16.mxu0 0
  %1402 = vmatpush1.bf16.msra.mxu0 0
  %1403 = vmatprep.subr.bf16.mxu0 0
  %1404 = vmatpush1.bf16.msra.mxu0 0
  %1405 = vmatprep.subr.bf16.mxu0 0
  %1406 = vmatpush1.bf16.msra.mxu0 0
  %1407 = vmatprep.subr.bf16.mxu0 0
  %1408 = vmatpush1.bf16.msra.mxu0 0
  %1409 = vmatprep.subr.bf16.mxu0 0
  %1410 = vmatpush1.bf16.msra.mxu0 0
  %1411 = vmatprep.subr.bf16.mxu0 0
  %1412 = vmatpush1.bf16.msra.mxu0 0
  %1413 = vmatprep.subr.bf16.mxu0 0
  %1414 = vmatpush1.bf16.msra.mxu0 0
  %1415 = vmatprep.subr.bf16.mxu0 0
  %1416 = vmatpush1.bf16.msra.mxu0 0
  %1417 = vmatprep.subr.bf16.mxu0 0
  %1418 = vmatpush1.bf16.msra.mxu0 0
  %1419 = vmatprep.subr.bf16.mxu0 0
  %1420 = vmatpush1.bf16.msra.mxu0 0
  %1421 = vmatprep.subr.bf16.mxu0 0
  %1422 = vmatpush1.bf16.msra.mxu0 0
  %1423 = vmatprep.subr.bf16.mxu0 0
  %1424 = vmatpush1.bf16.msra.mxu0 0
  %1425 = vmatprep.mubr.bf16.mxu0 0
  %1426 = vmatmul.mubr.bf16.gmra.mrb[0].mxu0 %v1391
  %v1427 = vpop.f32.mrb[0].mxu0
  %v1428 = vadd.f32 0.0, %v1427
  %v1429 = vpop.f32.mrb[0].mxu0
  %v1430 = vpop.f32.mrb[0].mxu0
  %v1431 = vpop.f32.mrb[0].mxu0
  %1432 = vdwg.mxu0
  %v1433 = vadd.f32 %v1385, %v1428
  %v1434 = vld [vmem:[#allocation2 + $0x8] sm:$0xff]
  %v1435 = vpack.c.bf16 %v1366, %v1366
  %1437 = vrot.lane.b32.xlu0 %v1435, 64
  %v1438 = vpop.permute.xlu0 %1437
  %v1440 = vsel %vm100, %v1438, 0
  %1442 = vmatprep.subr.bf16.mxu0 0
  %1443 = vmatpush1.bf16.msra.mxu0 %v284
  %1444 = vmatprep.subr.bf16.mxu0 0
  %1445 = vmatpush1.bf16.msra.mxu0 %v285
  %1446 = vmatprep.subr.bf16.mxu0 0
  %1447 = vmatpush1.bf16.msra.mxu0 0
  %1448 = vmatprep.subr.bf16.mxu0 0
  %1449 = vmatpush1.bf16.msra.mxu0 0
  %1450 = vmatprep.subr.bf16.mxu0 0
  %1451 = vmatpush1.bf16.msra.mxu0 0
  %1452 = vmatprep.subr.bf16.mxu0 0
  %1453 = vmatpush1.bf16.msra.mxu0 0
  %1454 = vmatprep.subr.bf16.mxu0 0
  %1455 = vmatpush1.bf16.msra.mxu0 0
  %1456 = vmatprep.subr.bf16.mxu0 0
  %1457 = vmatpush1.bf16.msra.mxu0 0
  %1458 = vmatprep.subr.bf16.mxu0 0
  %1459 = vmatpush1.bf16.msra.mxu0 0
  %1460 = vmatprep.subr.bf16.mxu0 0
  %1461 = vmatpush1.bf16.msra.mxu0 0
  %1462 = vmatprep.subr.bf16.mxu0 0
  %1463 = vmatpush1.bf16.msra.mxu0 0
  %1464 = vmatprep.subr.bf16.mxu0 0
  %1465 = vmatpush1.bf16.msra.mxu0 0
  %1466 = vmatprep.subr.bf16.mxu0 0
  %1467 = vmatpush1.bf16.msra.mxu0 0
  %1468 = vmatprep.subr.bf16.mxu0 0
  %1469 = vmatpush1.bf16.msra.mxu0 0
  %1470 = vmatprep.subr.bf16.mxu0 0
  %1471 = vmatpush1.bf16.msra.mxu0 0
  %1472 = vmatprep.subr.bf16.mxu0 0
  %1473 = vmatpush1.bf16.msra.mxu0 0
  %1474 = vmatprep.mubr.bf16.mxu0 0
  %1475 = vmatmul.mubr.bf16.gmra.mrb[0].mxu0 %v1440
  %v1476 = vpop.f32.mrb[0].mxu0
  %v1477 = vadd.f32 0.0, %v1476
  %v1478 = vpop.f32.mrb[0].mxu0
  %v1479 = vpop.f32.mrb[0].mxu0
  %v1480 = vpop.f32.mrb[0].mxu0
  %1481 = vdwg.mxu0
  %v1482 = vadd.f32 %v1434, %v1477
  %v1483 = vxor.u32 %v1433, 2147483648
  %v1484 = vxor.u32 %v1482, 2147483648
  %v1485 = vmul.f32 %v1483, 1.442695
  %v1486 = vpow.pop %v1485
  %v1487 = vmul.f32 %v1484, 1.442695
  %v1488 = vpow.pop %v1487
  %v1489 = vadd.f32 %v1486, 1.0
  %v1490 = vadd.f32 %v1488, 1.0
  %v1491 = vrcp.pop %v1489
  %v1492 = vmul.f32 1.0, %v1491
  %v1493 = vrcp.pop %v1490
  %v1494 = vmul.f32 1.0, %v1493
  %v1495 = vtanh.pop %v1433
  %v1496 = vtanh.pop %v1482
  %v1497 = vmul.f32 %v1492, %v1353
  %v1498 = vmul.f32 %v1494, %v1354
  %1501 = vrot.lane.b32.xlu0 %v1495, 32
  %v1502 = vpop.permute.xlu0 %1501
  %1503 = vrot.lane.b32.xlu0 %v1496, 32
  %v1504 = vpop.permute.xlu0 %1503
  %v1507 = vmul.f32 %v1492, %v1502
  %v1508 = vmul.f32 %v1494, %v1504
  %1511 = vrot.lane.b32.xlu0 %v1507, 32
  %v1512 = vpop.permute.xlu0 %1511
  %1513 = vrot.lane.b32.xlu0 %v1508, 32
  %v1514 = vpop.permute.xlu0 %1513
  %v1517 = vadd.f32 %v1497, %v1512
  %v1518 = vadd.f32 %v1498, %v1514
  %v1519 = vtanh.pop %v1517
  %v1520 = vtanh.pop %v1518
  %1523 = vrot.lane.b32.xlu0 %v1519, 32
  %v1524 = vpop.permute.xlu0 %1523
  %1525 = vrot.lane.b32.xlu0 %v1520, 32
  %v1526 = vpop.permute.xlu0 %1525
  %v1529 = vmul.f32 %v1492, %v1524
  %v1530 = vmul.f32 %v1494, %v1526
  %v1531 = vtanh.pop %v1529
  %v1532 = vtanh.pop %v1530
  %v1533 = vmul.f32 %v1531, %v380
  %v1534 = vmul.f32 %v1532, %v382
  %1537 = vrot.lane.b32.xlu0 %v1533, 64
  %v1538 = vpop.permute.xlu0 %1537
  %1539 = vrot.lane.b32.xlu0 %v1534, 64
  %v1540 = vpop.permute.xlu0 %1539
  %v1543 = vsel %vm100, %v1538, 0.0
  %1544 = vadd.xlane.f32.xlu0 %v1543
  %v1545 = vpop.xlane.xlu0 %1544
  %v1546 = vsel %vm100, %v1540, 0.0
  %1547 = vadd.xlane.f32.xlu0 %v1546
  %v1548 = vpop.xlane.xlu0 %1547
  %v1549 = vadd.f32 %v397, %v1548
  %v1550 = vadd.f32 %v561, %v1384
  %v1551 = vadd.f32 %v725, %v1220
  %v1552 = vadd.f32 %v889, %v1056
  %v1553 = vadd.f32 %v1053, %v892
  %v1554 = vadd.f32 %v1217, %v728
  %v1555 = vadd.f32 %v1381, %v564
  %v1556 = vadd.f32 %v1545, %v400
  %v1557 = vmax.f32 %v1549, %v1550
  %v1558 = vmax.f32 %v1557, %v1551
  %v1559 = vmax.f32 %v1558, %v1552
  %v1560 = vmax.f32 %v1559, %v1553
  %v1561 = vmax.f32 %v1560, %v1554
  %v1562 = vmax.f32 %v1561, %v1555
  %v1563 = vmax.f32 %v1562, %v1556
  %v1564 = vsub.f32 %v1549, %v1563
  %v1565 = vmul.f32 %v1564, 1.442695
  %v1566 = vpow.pop %v1565
  %v1567 = vsub.f32 %v1550, %v1563
  %v1568 = vmul.f32 %v1567, 1.442695
  %v1569 = vpow.pop %v1568
  %v1570 = vsub.f32 %v1551, %v1563
  %v1571 = vmul.f32 %v1570, 1.442695
  %v1572 = vpow.pop %v1571
  %v1573 = vsub.f32 %v1552, %v1563
  %v1574 = vmul.f32 %v1573, 1.442695
  %v1575 = vpow.pop %v1574
  %v1576 = vsub.f32 %v1553, %v1563
  %v1577 = vmul.f32 %v1576, 1.442695
  %v1578 = vpow.pop %v1577
  %v1579 = vsub.f32 %v1554, %v1563
  %v1580 = vmul.f32 %v1579, 1.442695
  %v1581 = vpow.pop %v1580
  %v1582 = vsub.f32 %v1555, %v1563
  %v1583 = vmul.f32 %v1582, 1.442695
  %v1584 = vpow.pop %v1583
  %v1585 = vsub.f32 %v1556, %v1563
  %v1586 = vmul.f32 %v1585, 1.442695
  %v1587 = vpow.pop %v1586
  %v1588 = vadd.f32 %v1566, %v1569
  %v1589 = vadd.f32 %v1588, %v1572
  %v1590 = vadd.f32 %v1589, %v1575
  %v1591 = vadd.f32 %v1590, %v1578
  %v1592 = vadd.f32 %v1591, %v1581
  %v1593 = vadd.f32 %v1592, %v1584
  %v1594 = vadd.f32 %v1593, %v1587
  %v1595 = vrcp.pop %v1594
  %v1596 = vmul.f32 %v1566, %v1595
  %v1597 = vmul.f32 %v1569, %v1595
  %v1598 = vmul.f32 %v1572, %v1595
  %v1599 = vmul.f32 %v1575, %v1595
  %v1600 = vmul.f32 %v1578, %v1595
  %v1601 = vmul.f32 %v1581, %v1595
  %v1602 = vmul.f32 %v1584, %v1595
  %v1603 = vmul.f32 %v1587, %v1595
  %1605 = vset.pattern.permute.xlu0 0
  %1606 = vperm.xlu0 %1605, %v1596
  %v1607 = vpop.permute.xlu0 %1606
  %1610 = vset.pattern.permute.xlu0 0
  %1611 = vperm.xlu0 %1610, %v1603
  %v1612 = vpop.permute.xlu0 %1611
  %v1614 = vmul.f32 %v1607, %v375
  %v1615 = vmul.f32 %v1612, %v376
  %v1616 = vadd.f32 %v1614, 0.0
  %v1617 = vadd.f32 %v1615, 0.0
  %1619 = vset.pattern.permute.xlu0 0
  %1620 = vperm.xlu0 %1619, %v1597
  %v1621 = vpop.permute.xlu0 %1620
  %1624 = vset.pattern.permute.xlu0 0
  %1625 = vperm.xlu0 %1624, %v1602
  %v1626 = vpop.permute.xlu0 %1625
  %v1628 = vmul.f32 %v1621, %v545
  %v1629 = vmul.f32 %v1626, %v546
  %v1630 = vadd.f32 %v1616, %v1628
  %v1631 = vadd.f32 %v1617, %v1629
  %1633 = vset.pattern.permute.xlu0 0
  %1634 = vperm.xlu0 %1633, %v1598
  %v1635 = vpop.permute.xlu0 %1634
  %1638 = vset.pattern.permute.xlu0 0
  %1639 = vperm.xlu0 %1638, %v1601
  %v1640 = vpop.permute.xlu0 %1639
  %v1642 = vmul.f32 %v1635, %v709
  %v1643 = vmul.f32 %v1640, %v710
  %v1644 = vadd.f32 %v1630, %v1642
  %v1645 = vadd.f32 %v1631, %v1643
  %1647 = vset.pattern.permute.xlu0 0
  %1648 = vperm.xlu0 %1647, %v1599
  %v1649 = vpop.permute.xlu0 %1648
  %1652 = vset.pattern.permute.xlu0 0
  %1653 = vperm.xlu0 %1652, %v1600
  %v1654 = vpop.permute.xlu0 %1653
  %v1656 = vmul.f32 %v1649, %v873
  %v1657 = vmul.f32 %v1654, %v874
  %v1658 = vadd.f32 %v1644, %v1656
  %v1659 = vadd.f32 %v1645, %v1657
  %v1660 = vmul.f32 %v1654, %v1037
  %v1661 = vmul.f32 %v1649, %v1038
  %v1662 = vadd.f32 %v1658, %v1660
  %v1663 = vadd.f32 %v1659, %v1661
  %v1664 = vmul.f32 %v1640, %v1201
  %v1665 = vmul.f32 %v1635, %v1202
  %v1666 = vadd.f32 %v1662, %v1664
  %v1667 = vadd.f32 %v1663, %v1665
  %v1668 = vmul.f32 %v1626, %v1365
  %v1669 = vmul.f32 %v1621, %v1366
  %v1670 = vadd.f32 %v1666, %v1668
  %v1671 = vadd.f32 %v1667, %v1669
  %v1672 = vmul.f32 %v1612, %v1529
  %v1673 = vmul.f32 %v1607, %v1530
  %v1674 = vadd.f32 %v1670, %v1672
  %v1675 = vadd.f32 %v1671, %v1673
  %v1676 = vmax.f32 %v1674, 0.0
  %v1677 = vmax.f32 %v1675, 0.0
  %v1678 = vpack.c.bf16 %v1676, %v1676
  %v1679 = vld [vmem:[%s6] sm:$0xf]
  %v1680 = vld [vmem:[%s6 + $0x4] sm:$0xf]
  %v1681 = vld [vmem:[%s6 + $0x8] sm:$0xf]
  %v1682 = vld [vmem:[%s6 + $0xc] sm:$0xf]
  %v1683 = vpack.c.bf16 %v1677, %v1677
  %v1684 = vld [vmem:[%s6 + $0x10] sm:$0xf]
  %v1685 = vld [vmem:[%s6 + $0x14] sm:$0xf]
  %v1686 = vld [vmem:[%s6 + $0x18] sm:$0xf]
  %v1687 = vld [vmem:[%s6 + $0x1c] sm:$0xf]
  %1689 = vrot.lane.b32.xlu0 %v1683, 64
  %v1690 = vpop.permute.xlu0 %1689
  %v1695 = vunpack.c.l.b16 %v1684
  %v1696 = vunpack.c.l.b16 %v1685
  %v1697 = vunpack.c.l.b16 %v1686
  %v1698 = vunpack.c.l.b16 %v1687
  %v1699 = vpack.c.b16 %v1696, %v1695
  %v1700 = vpack.c.b16 %v1698, %v1697
  %v1704 = vsel %vm100, %v1690, 0
  %1706 = vmatprep.subr.bf16.mxu0 0
  %1707 = vmatpush1.bf16.msra.mxu0 %v1699
  %1708 = vmatprep.subr.bf16.mxu0 0
  %1709 = vmatpush1.bf16.msra.mxu0 %v1700
  %1710 = vmatprep.subr.bf16.mxu0 0
  %1711 = vmatpush1.bf16.msra.mxu0 0
  %1712 = vmatprep.subr.bf16.mxu0 0
  %1713 = vmatpush1.bf16.msra.mxu0 0
  %1714 = vmatprep.subr.bf16.mxu0 0
  %1715 = vmatpush1.bf16.msra.mxu0 0
  %1716 = vmatprep.subr.bf16.mxu0 0
  %1717 = vmatpush1.bf16.msra.mxu0 0
  %1718 = vmatprep.subr.bf16.mxu0 0
  %1719 = vmatpush1.bf16.msra.mxu0 0
  %1720 = vmatprep.subr.bf16.mxu0 0
  %1721 = vmatpush1.bf16.msra.mxu0 0
  %1722 = vmatprep.subr.bf16.mxu0 0
  %1723 = vmatpush1.bf16.msra.mxu0 0
  %1724 = vmatprep.subr.bf16.mxu0 0
  %1725 = vmatpush1.bf16.msra.mxu0 0
  %1726 = vmatprep.subr.bf16.mxu0 0
  %1727 = vmatpush1.bf16.msra.mxu0 0
  %1728 = vmatprep.subr.bf16.mxu0 0
  %1729 = vmatpush1.bf16.msra.mxu0 0
  %1730 = vmatprep.subr.bf16.mxu0 0
  %1731 = vmatpush1.bf16.msra.mxu0 0
  %1732 = vmatprep.subr.bf16.mxu0 0
  %1733 = vmatpush1.bf16.msra.mxu0 0
  %1734 = vmatprep.subr.bf16.mxu0 0
  %1735 = vmatpush1.bf16.msra.mxu0 0
  %1736 = vmatprep.subr.bf16.mxu0 0
  %1737 = vmatpush1.bf16.msra.mxu0 0
  %1738 = vmatprep.mubr.bf16.mxu0 0
  %1739 = vmatmul.mubr.bf16.gmra.mrb[0].mxu0 %v1704
  %v1740 = vpop.f32.mrb[0].mxu0
  %v1741 = vadd.f32 0.0, %v1740
  %v1742 = vpop.f32.mrb[0].mxu0
  %v1743 = vpop.f32.mrb[0].mxu0
  %v1744 = vpop.f32.mrb[0].mxu0
  %1745 = vdwg.mxu0
  %1747 = vrot.lane.b32.xlu0 %v1678, 64
  %v1748 = vpop.permute.xlu0 %1747
  %v1753 = vunpack.c.l.b16 %v1679
  %v1754 = vunpack.c.l.b16 %v1680
  %v1755 = vunpack.c.l.b16 %v1681
  %v1756 = vunpack.c.l.b16 %v1682
  %v1757 = vpack.c.b16 %v1754, %v1753
  %v1758 = vpack.c.b16 %v1756, %v1755
  %v1762 = vsel %vm100, %v1748, 0
  %1764 = vmatprep.subr.bf16.mxu0 0
  %1765 = vmatpush1.bf16.msra.mxu0 %v1757
  %1766 = vmatprep.subr.bf16.mxu0 0
  %1767 = vmatpush1.bf16.msra.mxu0 %v1758
  %1768 = vmatprep.subr.bf16.mxu0 0
  %1769 = vmatpush1.bf16.msra.mxu0 0
  %1770 = vmatprep.subr.bf16.mxu0 0
  %1771 = vmatpush1.bf16.msra.mxu0 0
  %1772 = vmatprep.subr.bf16.mxu0 0
  %1773 = vmatpush1.bf16.msra.mxu0 0
  %1774 = vmatprep.subr.bf16.mxu0 0
  %1775 = vmatpush1.bf16.msra.mxu0 0
  %1776 = vmatprep.subr.bf16.mxu0 0
  %1777 = vmatpush1.bf16.msra.mxu0 0
  %1778 = vmatprep.subr.bf16.mxu0 0
  %1779 = vmatpush1.bf16.msra.mxu0 0
  %1780 = vmatprep.subr.bf16.mxu0 0
  %1781 = vmatpush1.bf16.msra.mxu0 0
  %1782 = vmatprep.subr.bf16.mxu0 0
  %1783 = vmatpush1.bf16.msra.mxu0 0
  %1784 = vmatprep.subr.bf16.mxu0 0
  %1785 = vmatpush1.bf16.msra.mxu0 0
  %1786 = vmatprep.subr.bf16.mxu0 0
  %1787 = vmatpush1.bf16.msra.mxu0 0
  %1788 = vmatprep.subr.bf16.mxu0 0
  %1789 = vmatpush1.bf16.msra.mxu0 0
  %1790 = vmatprep.subr.bf16.mxu0 0
  %1791 = vmatpush1.bf16.msra.mxu0 0
  %1792 = vmatprep.subr.bf16.mxu0 0
  %1793 = vmatpush1.bf16.msra.mxu0 0
  %1794 = vmatprep.subr.bf16.mxu0 0
  %1795 = vmatpush1.bf16.msra.mxu0 0
  %1796 = vmatprep.mubr.bf16.mxu0 0
  %1797 = vmatmul.mubr.bf16.gmra.mrb[0].mxu0 %v1762
  %v1798 = vpop.f32.mrb[0].mxu0
  %v1799 = vadd.f32 %v1741, %v1798
  %v1800 = vpop.f32.mrb[0].mxu0
  %v1801 = vpop.f32.mrb[0].mxu0
  %v1802 = vpop.f32.mrb[0].mxu0
  %1803 = vdwg.mxu0
  %v1804 = vld [vmem:[%s7] sm:$0x1]
  %v1806 = vlaneseq
  %v1807 = vshrl.u32 %v1806, 7
  %v1808 = vsub.s32 0, %v1807
  %v1809 = vrot.slane %v1804, %v1808
  %v1811 = vadd.f32 %v1799, %v1809
  %v1812 = vpack.c.bf16 %v1811, %v1811
  %v1813 = vld [vmem:[%s8] sm:$0xf]
  %v1814 = vld [vmem:[%s8 + $0x4] sm:$0xf]
  %v1815 = vld [vmem:[%s8 + $0x8] sm:$0xf]
  %v1816 = vld [vmem:[%s8 + $0xc] sm:$0xf]
  %v1817 = vld [vmem:[%s8 + $0x10] sm:$0xf]
  %v1818 = vld [vmem:[%s8 + $0x14] sm:$0xf]
  %v1819 = vld [vmem:[%s8 + $0x18] sm:$0xf]
  %v1820 = vld [vmem:[%s8 + $0x1c] sm:$0xf]
  %v1821 = vld [vmem:[%s9] sm:$0x1]
  %v1823 = vlaneseq
  %v1824 = vshrl.u32 %v1823, 7
  %v1825 = vsub.s32 0, %v1824
  %v1826 = vrot.slane %v1821, %v1825
  %v1836 = vunpack.c.l.b16 %v1813
  %v1837 = vunpack.c.l.b16 %v1814
  %v1838 = vunpack.c.l.b16 %v1815
  %v1839 = vunpack.c.l.b16 %v1816
  %v1840 = vunpack.c.l.b16 %v1817
  %v1841 = vunpack.c.l.b16 %v1818
  %v1842 = vunpack.c.l.b16 %v1819
  %v1843 = vunpack.c.l.b16 %v1820
  %v1844 = vpack.c.b16 %v1837, %v1836
  %v1845 = vpack.c.b16 %v1839, %v1838
  %v1846 = vpack.c.b16 %v1841, %v1840
  %v1847 = vpack.c.b16 %v1843, %v1842
  %vm1852 = vcmask 523264
  %v1854 = vsel %vm1852, %v1812, 0
  %1856 = vmatprep.subr.bf16.mxu0 0
  %1857 = vmatpush1.bf16.msra.mxu0 %v1844
  %1858 = vmatprep.subr.bf16.mxu0 0
  %1859 = vmatpush1.bf16.msra.mxu0 %v1845
  %1860 = vmatprep.subr.bf16.mxu0 0
  %1861 = vmatpush1.bf16.msra.mxu0 %v1846
  %1862 = vmatprep.subr.bf16.mxu0 0
  %1863 = vmatpush1.bf16.msra.mxu0 %v1847
  %1864 = vmatprep.subr.bf16.mxu0 0
  %1865 = vmatpush1.bf16.msra.mxu0 0
  %1866 = vmatprep.subr.bf16.mxu0 0
  %1867 = vmatpush1.bf16.msra.mxu0 0
  %1868 = vmatprep.subr.bf16.mxu0 0
  %1869 = vmatpush1.bf16.msra.mxu0 0
  %1870 = vmatprep.subr.bf16.mxu0 0
  %1871 = vmatpush1.bf16.msra.mxu0 0
  %1872 = vmatprep.subr.bf16.mxu0 0
  %1873 = vmatpush1.bf16.msra.mxu0 0
  %1874 = vmatprep.subr.bf16.mxu0 0
  %1875 = vmatpush1.bf16.msra.mxu0 0
  %1876 = vmatprep.subr.bf16.mxu0 0
  %1877 = vmatpush1.bf16.msra.mxu0 0
  %1878 = vmatprep.subr.bf16.mxu0 0
  %1879 = vmatpush1.bf16.msra.mxu0 0
  %1880 = vmatprep.subr.bf16.mxu0 0
  %1881 = vmatpush1.bf16.msra.mxu0 0
  %1882 = vmatprep.subr.bf16.mxu0 0
  %1883 = vmatpush1.bf16.msra.mxu0 0
  %1884 = vmatprep.subr.bf16.mxu0 0
  %1885 = vmatpush1.bf16.msra.mxu0 0
  %1886 = vmatprep.subr.bf16.mxu0 0
  %1887 = vmatpush1.bf16.msra.mxu0 0
  %1888 = vmatprep.mubr.bf16.mxu0 0
  %1889 = vmatmul.mubr.bf16.gmra.mrb[0].mxu0 %v1854
  %v1890 = vpop.f32.mrb[0].mxu0
  %v1891 = vadd.f32 %v1826, %v1890
  %v1892 = vpop.f32.mrb[0].mxu0
  %v1893 = vpop.f32.mrb[0].mxu0
  %v1894 = vpop.f32.mrb[0].mxu0
  %1895 = vdwg.mxu0
  %vm1896 = vcmask 31744
  %1897 = vst.msk [vmem:[%s10] sm:$0xff] %vm1896, %v1891
  // Predicated region
  $region42: #{text_lstm_attention_forward.1} parent=0 // pred_check
    _
  $region43: #{text_lstm_attention_forward.1} parent=0 // pred_check_branch
    %1899 = sbr.rel (0) target = $region45
  $region44: #{text_lstm_attention_forward.1} parent=0 // pred_region
    _
  $region45: #{text_lstm_attention_forward.1} parent=0 // pred_fallthru
    _
  // Predicated region
  $region46: #{text_lstm_attention_forward.1} parent=0 // pred_check
    _
  $region47: #{text_lstm_attention_forward.1} parent=0 // pred_check_branch
    %1901 = sbr.rel (0) target = $region49
  $region48: #{text_lstm_attention_forward.1} parent=0 // pred_region
    _
  $region49: #{text_lstm_attention_forward.1} parent=0 // pred_fallthru
    _

</llo_original>
